<compile_context>
chip_gen: v5e
topology: v5e:2x2
jax: 0.10.0
libtpu: 0.0.40
codegen_flags: <defaults>
</compile_context>

<pallas_src>
import jax
import jax.numpy as jnp
import numpy as np
from jax import lax
from jax.experimental import pallas as pl
from jax.experimental.pallas import tpu as pltpu

NEG = float(jnp.finfo(jnp.float32).min)   # stands in for -inf (center tap always valid)

# Row layout of the precomputed constant mask input (padded to 24 sublanes).
_VMASK_ROW = 0     # rows 0..8  : per-tap zero-pad validity   (1.0 valid / 0.0 invalid)
_NEGADD_ROW = 9    # rows 9..17 : per-tap additive max mask   (0.0 valid / -1e30 invalid)
_INV_ROW = 18      # row 18     : 1 / pool divisor (count_include_pad=False: 9/6/4)
_MASK_ROWS = 24


# ----------------------------- Pallas kernel ------------------------------ #
def _make_edge_kernel(ops_idx, nb, C, H, W):
    use_skip = 0 in ops_idx
    use_max = 1 in ops_idx
    use_avg = 2 in ops_idx
    use_conv = 3 in ops_idx
    has_partial = use_skip or use_max or use_avg
    HW = H * W

    def kernel(x_ref, w_ref, aff_ref, m_ref, o_ref, patch_ref):
        # x_ref    : (Nb, C, HW)    f32   Nb images; channels on sublanes, flat
        #                                 spatial on lanes (lane-dense everywhere).
        # w_ref    : (C, 9*C)       bf16  im2col conv weight, cols = (kh, kw, c_in).
        # aff_ref  : (C, 2)         f32   [:,0]=gamma, [:,1]=beta.
        # m_ref    : (24, HW)       f32   precomputed border masks / inv divisor.
        # o_ref    : (Nb, C, HW)    f32
        # patch_ref: (9*C, Nb*HW)   bf16  VMEM scratch: batched im2col patch matrix.

        # ---- Pass 1: per image, build im2col taps + pooling partial -------- #
        for b in range(nb):
            x2d = x_ref[b]                                        # (C, HW) f32
            sump = jnp.zeros_like(x2d) if use_avg else None
            maxp = jnp.full_like(x2d, NEG) if use_max else None

            # 3x3 window: 9 taps as XLU lane rotations of the flat image; halo
            # semantics come from the precomputed masks (x0 for conv/avg,
            # -1e30 additive for max).
            for dh in (-1, 0, 1):
                for dw in (-1, 0, 1):
                    k = (dh + 1) * 3 + (dw + 1)
                    off = dh * W + dw
                    center = (off == 0)
                    t = x2d if center else pltpu.roll(x2d, (-off) % HW, axis=1)
                    if use_conv or use_avg:
                        tz = t if center else (
                            t * m_ref[_VMASK_ROW + k:_VMASK_ROW + k + 1, :])
                    if use_conv:
                        patch_ref[k * C:(k + 1) * C, b * HW:(b + 1) * HW] = (
                            tz.astype(jnp.bfloat16))
                    if use_avg:
                        sump = sump + tz
                    if use_max:
                        tm = t if center else (
                            t + m_ref[_NEGADD_ROW + k:_NEGADD_ROW + k + 1, :])
                        maxp = jnp.maximum(maxp, tm)

            if has_partial:
                partial = x2d if use_skip else jnp.zeros_like(x2d)
                if use_max:
                    partial = partial + maxp
                if use_avg:
                    # Exact precomputed reciprocal on a (1, HW) row; broadcast mul.
                    partial = partial + sump * m_ref[_INV_ROW:_INV_ROW + 1, :]
                o_ref[b] = partial

        # ---- Pass 2: ONE wide MXU matmul for the whole batch block --------- #
        if use_conv:
            conv = jnp.dot(w_ref[...], patch_ref[...],
                           preferred_element_type=jnp.float32)     # (C, Nb*HW)
            conv = conv * aff_ref[:, 0:1] + aff_ref[:, 1:2]        # affine (f32)
            conv = jnp.clip(conv, -1.0, 1.0)                       # hardtanh
            for b in range(nb):
                cb = conv[:, b * HW:(b + 1) * HW]                  # lane-aligned slice
                o_ref[b] = (o_ref[b] + cb) if has_partial else cb

    return kernel


# ------------------------- host-side constant masks ------------------------ #
def _build_mask_rows(h, w):
    hw = h * w
    rows = np.arange(hw) // w
    cols = np.arange(hw) % w
    top = rows == 0
    bot = rows == h - 1
    left = cols == 0
    right = cols == w - 1
    m = np.zeros((_MASK_ROWS, hw), np.float32)
    for dh in (-1, 0, 1):
        for dw in (-1, 0, 1):
            k = (dh + 1) * 3 + (dw + 1)
            invalid = np.zeros(hw, bool)
            if dh < 0:
                invalid |= top
            if dh > 0:
                invalid |= bot
            if dw < 0:
                invalid |= left
            if dw > 0:
                invalid |= right
            valid = ~invalid
            m[_VMASK_ROW + k] = valid.astype(np.float32)
            m[_NEGADD_ROW + k] = np.where(valid, 0.0, -1e30).astype(np.float32)
    rcnt = 3.0 - top.astype(np.float32) - bot.astype(np.float32)
    ccnt = 3.0 - left.astype(np.float32) - right.astype(np.float32)
    m[_INV_ROW] = 1.0 / (rcnt * ccnt)           # exact f32 reciprocal of 9/6/4
    return jnp.asarray(m)


def _choose_batch_block(n, max_nb=8):
    # Largest divisor of n that is <= max_nb while keeping >= 2 grid steps
    # (so v7x's two TensorCores both get work); v5e/v6e are fine either way.
    best = 1
    for nb in range(1, min(max_nb, n) + 1):
        if n % nb == 0 and (n // nb >= 2 or n == 1):
            best = nb
    return best


# -------------------------------- wrapper ---------------------------------- #
def eval_edge_forward(x_nchw, w_oihw, gamma, beta, ops_idx, max_images_per_step=8):
    """x_nchw: (N, C, H, W) f32, w_oihw: (C, C, 3, 3), gamma/beta: (C,)."""
    n, c, h, w = x_nchw.shape
    hw = h * w
    nb = _choose_batch_block(n, max_images_per_step)

    x2 = x_nchw.reshape(n, c, hw)                   # free row-major collapse
    # im2col weight: rows = C_out, cols ordered (kh, kw, C_in); bf16 for MXU.
    w2 = jnp.transpose(w_oihw, (0, 2, 3, 1)).reshape(c, 9 * c).astype(jnp.bfloat16)
    aff = jnp.stack([gamma, beta], axis=1).astype(jnp.float32)      # (C, 2)
    masks = _build_mask_rows(h, w)                                  # (24, HW)

    kernel = _make_edge_kernel(ops_idx, nb, c, h, w)
    out = pl.pallas_call(
        kernel,
        out_shape=jax.ShapeDtypeStruct((n, c, hw), jnp.float32),
        grid=(n // nb,),
        in_specs=[
            pl.BlockSpec((nb, c, hw), lambda i: (i, 0, 0)),          # images
            pl.BlockSpec((c, 9 * c), lambda i: (0, 0)),              # conv weight
            pl.BlockSpec((c, 2), lambda i: (0, 0)),                  # gamma/beta
            pl.BlockSpec((_MASK_ROWS, hw), lambda i: (0, 0)),        # masks / inv
        ],
        out_specs=pl.BlockSpec((nb, c, hw), lambda i: (i, 0, 0)),
        scratch_shapes=[pltpu.VMEM((9 * c, nb * hw), jnp.bfloat16)],  # im2col patch
        compiler_params=pltpu.CompilerParams(
            dimension_semantics=("parallel",),
            vmem_limit_bytes=32 * 1024 * 1024),
    )(x2, w2, aff, masks)
    return out.reshape(n, c, h, w)


# ------------------------------- reference --------------------------------- #
def eval_edge_reference(x, w, gamma, beta, ops_idx):
    outs = []
    if 0 in ops_idx:
        outs.append(x)
    if 1 in ops_idx:
        outs.append(lax.reduce_window(
            x, -jnp.inf, lax.max, (1, 1, 3, 3), (1, 1, 1, 1),
            [(0, 0), (0, 0), (1, 1), (1, 1)]))
    if 2 in ops_idx:
        s = lax.reduce_window(
            x, 0.0, lax.add, (1, 1, 3, 3), (1, 1, 1, 1),
            [(0, 0), (0, 0), (1, 1), (1, 1)])
        cnt = lax.reduce_window(
            jnp.ones_like(x[:, :1]), 0.0, lax.add, (1, 1, 3, 3), (1, 1, 1, 1),
            [(0, 0), (0, 0), (1, 1), (1, 1)])
        outs.append(s / cnt)
    if 3 in ops_idx:
        # Match kernel precision: bf16-rounded operands, f32 accumulation.
        xr = x.astype(jnp.bfloat16).astype(jnp.float32)
        wr = w.astype(jnp.bfloat16).astype(jnp.float32)
        y = lax.conv_general_dilated(
            xr, wr, (1, 1), [(1, 1), (1, 1)],
            dimension_numbers=("NCHW", "OIHW", "NCHW"))
        y = y * gamma.reshape(1, -1, 1, 1) + beta.reshape(1, -1, 1, 1)
        outs.append(jnp.clip(y, -1.0, 1.0))
    acc = outs[0]
    for o in outs[1:]:
        acc = acc + o
    return acc


# ---------------------------------- main ------------------------------------ #
if __name__ == "__main__":
    N, C, H, W = 4, 32, 16, 16
    ops_idx = (0, 1, 2, 3)          # edge selects all 4 primitives -> summed

    key = jax.random.PRNGKey(0)
    kx, kw, kg, kb = jax.random.split(key, 4)
    x = jax.random.normal(kx, (N, C, H, W), jnp.float32)
    w = jax.random.normal(kw, (C, C, 3, 3), jnp.float32) * 0.1
    gamma = 1.0 + 0.1 * jax.random.normal(kg, (C,), jnp.float32)
    beta = 0.01 * jax.random.normal(kb, (C,), jnp.float32)

    out = eval_edge_forward(x, w, gamma, beta, ops_idx)
    out = jax.block_until_ready(out)

    ref = eval_edge_reference(x, w, gamma, beta, ops_idx)
    np.testing.assert_allclose(np.asarray(out), np.asarray(ref),
                               rtol=1e-4, atol=1e-4)
    print("KERNEL_OK")
</pallas_src>

<mosaic_0001>
module attributes {stable_mosaic.version = 11 : i64} {
  func.func @kernel(%arg0: i32, %arg1: memref<2x32x256xf32, #tpu.memory_space<vmem>>, %arg2: memref<32x288xbf16, #tpu.memory_space<vmem>>, %arg3: memref<32x2xf32, #tpu.memory_space<vmem>>, %arg4: memref<24x256xf32, #tpu.memory_space<vmem>>, %arg5: memref<2x32x256xf32, #tpu.memory_space<vmem>>, %arg6: memref<288x512xbf16, #tpu.memory_space<vmem>>) attributes {dimension_semantics = [#tpu.dimension_semantics<parallel>], iteration_bounds = array<i64: 2>, scalar_prefetch = 0 : i64, scratch_operands = 1 : i64, tpu.core_type = #tpu.core_type<tc>, window_params = [{transform_indices = @transform_0, window_bounds = array<i64: 2, 32, 256>}, {pipeline_mode = #tpu.pipeline_mode<synchronous>, transform_indices = @transform_1, window_bounds = array<i64: 32, 288>}, {pipeline_mode = #tpu.pipeline_mode<synchronous>, transform_indices = @transform_2, window_bounds = array<i64: 32, 2>}, {pipeline_mode = #tpu.pipeline_mode<synchronous>, transform_indices = @transform_3, window_bounds = array<i64: 24, 256>}, {transform_indices = @transform_4, window_bounds = array<i64: 2, 32, 256>}]} {
    %c0 = arith.constant 0 : index
    %c0_0 = arith.constant 0 : index
    %c0_1 = arith.constant 0 : index
    %0 = vector.load %arg1[%c0, %c0_0, %c0_1] : memref<2x32x256xf32, #tpu.memory_space<vmem>>, vector<1x32x256xf32>
    %1 = vector.shape_cast %0 : vector<1x32x256xf32> to vector<32x256xf32>
    %cst = arith.constant 0.000000e+00 : f32
    %2 = vector.broadcast %cst : f32 to vector<32x256xf32>
    %cst_2 = arith.constant -3.40282347E+38 : f32
    %3 = vector.broadcast %cst_2 : f32 to vector<32x256xf32>
    %c17_i32 = arith.constant 17 : i32
    %4 = tpu.dynamic_rotate %1 by %c17_i32 dim 1 : vector<32x256xf32>, i32 -> vector<32x256xf32>
    %c0_3 = arith.constant 0 : index
    %c0_4 = arith.constant 0 : index
    %5 = vector.load %arg4[%c0_3, %c0_4] : memref<24x256xf32, #tpu.memory_space<vmem>>, vector<1x256xf32>
    %6 = vector.broadcast %5 : vector<1x256xf32> to vector<32x256xf32>
    %7 = arith.mulf %4, %6 : vector<32x256xf32>
    %8 = arith.truncf %7 : vector<32x256xf32> to vector<32x256xbf16>
    %c0_5 = arith.constant 0 : index
    %c0_6 = arith.constant 0 : index
    %9 = vector.load %arg6[%c0_5, %c0_6] : memref<288x512xbf16, #tpu.memory_space<vmem>>, vector<32x256xbf16>
    tpu.vector_store %arg6[%c0_5, %c0_6], %8 {strides = array<i32>} : memref<288x512xbf16, #tpu.memory_space<vmem>>, vector<32x256xbf16>,
    %10 = arith.addf %2, %7 : vector<32x256xf32>
    %c9 = arith.constant 9 : index
    %c0_7 = arith.constant 0 : index
    %11 = vector.load %arg4[%c9, %c0_7] : memref<24x256xf32, #tpu.memory_space<vmem>>, vector<1x256xf32>
    %12 = vector.broadcast %11 : vector<1x256xf32> to vector<32x256xf32>
    %13 = arith.addf %4, %12 : vector<32x256xf32>
    %14 = arith.maximumf %3, %13 : vector<32x256xf32>
    %c16_i32 = arith.constant 16 : i32
    %15 = tpu.dynamic_rotate %1 by %c16_i32 dim 1 : vector<32x256xf32>, i32 -> vector<32x256xf32>
    %c1 = arith.constant 1 : index
    %c0_8 = arith.constant 0 : index
    %16 = vector.load %arg4[%c1, %c0_8] : memref<24x256xf32, #tpu.memory_space<vmem>>, vector<1x256xf32>
    %17 = vector.broadcast %16 : vector<1x256xf32> to vector<32x256xf32>
    %18 = arith.mulf %15, %17 : vector<32x256xf32>
    %19 = arith.truncf %18 : vector<32x256xf32> to vector<32x256xbf16>
    %c32 = arith.constant 32 : index
    %c0_9 = arith.constant 0 : index
    %20 = vector.load %arg6[%c32, %c0_9] : memref<288x512xbf16, #tpu.memory_space<vmem>>, vector<32x256xbf16>
    tpu.vector_store %arg6[%c32, %c0_9], %19 {strides = array<i32>} : memref<288x512xbf16, #tpu.memory_space<vmem>>, vector<32x256xbf16>,
    %21 = arith.addf %10, %18 : vector<32x256xf32>
    %c10 = arith.constant 10 : index
    %c0_10 = arith.constant 0 : index
    %22 = vector.load %arg4[%c10, %c0_10] : memref<24x256xf32, #tpu.memory_space<vmem>>, vector<1x256xf32>
    %23 = vector.broadcast %22 : vector<1x256xf32> to vector<32x256xf32>
    %24 = arith.addf %15, %23 : vector<32x256xf32>
    %25 = arith.maximumf %14, %24 : vector<32x256xf32>
    %c15_i32 = arith.constant 15 : i32
    %26 = tpu.dynamic_rotate %1 by %c15_i32 dim 1 : vector<32x256xf32>, i32 -> vector<32x256xf32>
    %c2 = arith.constant 2 : index
    %c0_11 = arith.constant 0 : index
    %27 = vector.load %arg4[%c2, %c0_11] : memref<24x256xf32, #tpu.memory_space<vmem>>, vector<1x256xf32>
    %28 = vector.broadcast %27 : vector<1x256xf32> to vector<32x256xf32>
    %29 = arith.mulf %26, %28 : vector<32x256xf32>
    %30 = arith.truncf %29 : vector<32x256xf32> to vector<32x256xbf16>
    %c64 = arith.constant 64 : index
    %c0_12 = arith.constant 0 : index
    %31 = vector.load %arg6[%c64, %c0_12] : memref<288x512xbf16, #tpu.memory_space<vmem>>, vector<32x256xbf16>
    tpu.vector_store %arg6[%c64, %c0_12], %30 {strides = array<i32>} : memref<288x512xbf16, #tpu.memory_space<vmem>>, vector<32x256xbf16>,
    %32 = arith.addf %21, %29 : vector<32x256xf32>
    %c11 = arith.constant 11 : index
    %c0_13 = arith.constant 0 : index
    %33 = vector.load %arg4[%c11, %c0_13] : memref<24x256xf32, #tpu.memory_space<vmem>>, vector<1x256xf32>
    %34 = vector.broadcast %33 : vector<1x256xf32> to vector<32x256xf32>
    %35 = arith.addf %26, %34 : vector<32x256xf32>
    %36 = arith.maximumf %25, %35 : vector<32x256xf32>
    %c1_i32 = arith.constant 1 : i32
    %37 = tpu.dynamic_rotate %1 by %c1_i32 dim 1 : vector<32x256xf32>, i32 -> vector<32x256xf32>
    %c3 = arith.constant 3 : index
    %c0_14 = arith.constant 0 : index
    %38 = vector.load %arg4[%c3, %c0_14] : memref<24x256xf32, #tpu.memory_space<vmem>>, vector<1x256xf32>
    %39 = vector.broadcast %38 : vector<1x256xf32> to vector<32x256xf32>
    %40 = arith.mulf %37, %39 : vector<32x256xf32>
    %41 = arith.truncf %40 : vector<32x256xf32> to vector<32x256xbf16>
    %c96 = arith.constant 96 : index
    %c0_15 = arith.constant 0 : index
    %42 = vector.load %arg6[%c96, %c0_15] : memref<288x512xbf16, #tpu.memory_space<vmem>>, vector<32x256xbf16>
    tpu.vector_store %arg6[%c96, %c0_15], %41 {strides = array<i32>} : memref<288x512xbf16, #tpu.memory_space<vmem>>, vector<32x256xbf16>,
    %43 = arith.addf %32, %40 : vector<32x256xf32>
    %c12 = arith.constant 12 : index
    %c0_16 = arith.constant 0 : index
    %44 = vector.load %arg4[%c12, %c0_16] : memref<24x256xf32, #tpu.memory_space<vmem>>, vector<1x256xf32>
    %45 = vector.broadcast %44 : vector<1x256xf32> to vector<32x256xf32>
    %46 = arith.addf %37, %45 : vector<32x256xf32>
    %47 = arith.maximumf %36, %46 : vector<32x256xf32>
    %48 = arith.truncf %1 : vector<32x256xf32> to vector<32x256xbf16>
    %c128 = arith.constant 128 : index
    %c0_17 = arith.constant 0 : index
    %49 = vector.load %arg6[%c128, %c0_17] : memref<288x512xbf16, #tpu.memory_space<vmem>>, vector<32x256xbf16>
    tpu.vector_store %arg6[%c128, %c0_17], %48 {strides = array<i32>} : memref<288x512xbf16, #tpu.memory_space<vmem>>, vector<32x256xbf16>,
    %50 = arith.addf %43, %1 : vector<32x256xf32>
    %51 = arith.maximumf %47, %1 : vector<32x256xf32>
    %c255_i32 = arith.constant 255 : i32
    %52 = tpu.dynamic_rotate %1 by %c255_i32 dim 1 : vector<32x256xf32>, i32 -> vector<32x256xf32>
    %c5 = arith.constant 5 : index
    %c0_18 = arith.constant 0 : index
    %53 = vector.load %arg4[%c5, %c0_18] : memref<24x256xf32, #tpu.memory_space<vmem>>, vector<1x256xf32>
    %54 = vector.broadcast %53 : vector<1x256xf32> to vector<32x256xf32>
    %55 = arith.mulf %52, %54 : vector<32x256xf32>
    %56 = arith.truncf %55 : vector<32x256xf32> to vector<32x256xbf16>
    %c160 = arith.constant 160 : index
    %c0_19 = arith.constant 0 : index
    %57 = vector.load %arg6[%c160, %c0_19] : memref<288x512xbf16, #tpu.memory_space<vmem>>, vector<32x256xbf16>
    tpu.vector_store %arg6[%c160, %c0_19], %56 {strides = array<i32>} : memref<288x512xbf16, #tpu.memory_space<vmem>>, vector<32x256xbf16>,
    %58 = arith.addf %50, %55 : vector<32x256xf32>
    %c14 = arith.constant 14 : index
    %c0_20 = arith.constant 0 : index
    %59 = vector.load %arg4[%c14, %c0_20] : memref<24x256xf32, #tpu.memory_space<vmem>>, vector<1x256xf32>
    %60 = vector.broadcast %59 : vector<1x256xf32> to vector<32x256xf32>
    %61 = arith.addf %52, %60 : vector<32x256xf32>
    %62 = arith.maximumf %51, %61 : vector<32x256xf32>
    %c241_i32 = arith.constant 241 : i32
    %63 = tpu.dynamic_rotate %1 by %c241_i32 dim 1 : vector<32x256xf32>, i32 -> vector<32x256xf32>
    %c6 = arith.constant 6 : index
    %c0_21 = arith.constant 0 : index
    %64 = vector.load %arg4[%c6, %c0_21] : memref<24x256xf32, #tpu.memory_space<vmem>>, vector<1x256xf32>
    %65 = vector.broadcast %64 : vector<1x256xf32> to vector<32x256xf32>
    %66 = arith.mulf %63, %65 : vector<32x256xf32>
    %67 = arith.truncf %66 : vector<32x256xf32> to vector<32x256xbf16>
    %c192 = arith.constant 192 : index
    %c0_22 = arith.constant 0 : index
    %68 = vector.load %arg6[%c192, %c0_22] : memref<288x512xbf16, #tpu.memory_space<vmem>>, vector<32x256xbf16>
    tpu.vector_store %arg6[%c192, %c0_22], %67 {strides = array<i32>} : memref<288x512xbf16, #tpu.memory_space<vmem>>, vector<32x256xbf16>,
    %69 = arith.addf %58, %66 : vector<32x256xf32>
    %c15 = arith.constant 15 : index
    %c0_23 = arith.constant 0 : index
    %70 = vector.load %arg4[%c15, %c0_23] : memref<24x256xf32, #tpu.memory_space<vmem>>, vector<1x256xf32>
    %71 = vector.broadcast %70 : vector<1x256xf32> to vector<32x256xf32>
    %72 = arith.addf %63, %71 : vector<32x256xf32>
    %73 = arith.maximumf %62, %72 : vector<32x256xf32>
    %c240_i32 = arith.constant 240 : i32
    %74 = tpu.dynamic_rotate %1 by %c240_i32 dim 1 : vector<32x256xf32>, i32 -> vector<32x256xf32>
    %c7 = arith.constant 7 : index
    %c0_24 = arith.constant 0 : index
    %75 = vector.load %arg4[%c7, %c0_24] : memref<24x256xf32, #tpu.memory_space<vmem>>, vector<1x256xf32>
    %76 = vector.broadcast %75 : vector<1x256xf32> to vector<32x256xf32>
    %77 = arith.mulf %74, %76 : vector<32x256xf32>
    %78 = arith.truncf %77 : vector<32x256xf32> to vector<32x256xbf16>
    %c224 = arith.constant 224 : index
    %c0_25 = arith.constant 0 : index
    %79 = vector.load %arg6[%c224, %c0_25] : memref<288x512xbf16, #tpu.memory_space<vmem>>, vector<32x256xbf16>
    tpu.vector_store %arg6[%c224, %c0_25], %78 {strides = array<i32>} : memref<288x512xbf16, #tpu.memory_space<vmem>>, vector<32x256xbf16>,
    %80 = arith.addf %69, %77 : vector<32x256xf32>
    %c16 = arith.constant 16 : index
    %c0_26 = arith.constant 0 : index
    %81 = vector.load %arg4[%c16, %c0_26] : memref<24x256xf32, #tpu.memory_space<vmem>>, vector<1x256xf32>
    %82 = vector.broadcast %81 : vector<1x256xf32> to vector<32x256xf32>
    %83 = arith.addf %74, %82 : vector<32x256xf32>
    %84 = arith.maximumf %73, %83 : vector<32x256xf32>
    %c239_i32 = arith.constant 239 : i32
    %85 = tpu.dynamic_rotate %1 by %c239_i32 dim 1 : vector<32x256xf32>, i32 -> vector<32x256xf32>
    %c8 = arith.constant 8 : index
    %c0_27 = arith.constant 0 : index
    %86 = vector.load %arg4[%c8, %c0_27] : memref<24x256xf32, #tpu.memory_space<vmem>>, vector<1x256xf32>
    %87 = vector.broadcast %86 : vector<1x256xf32> to vector<32x256xf32>
    %88 = arith.mulf %85, %87 : vector<32x256xf32>
    %89 = arith.truncf %88 : vector<32x256xf32> to vector<32x256xbf16>
    %c256 = arith.constant 256 : index
    %c0_28 = arith.constant 0 : index
    %90 = vector.load %arg6[%c256, %c0_28] : memref<288x512xbf16, #tpu.memory_space<vmem>>, vector<32x256xbf16>
    tpu.vector_store %arg6[%c256, %c0_28], %89 {strides = array<i32>} : memref<288x512xbf16, #tpu.memory_space<vmem>>, vector<32x256xbf16>,
    %91 = arith.addf %80, %88 : vector<32x256xf32>
    %c17 = arith.constant 17 : index
    %c0_29 = arith.constant 0 : index
    %92 = vector.load %arg4[%c17, %c0_29] : memref<24x256xf32, #tpu.memory_space<vmem>>, vector<1x256xf32>
    %93 = vector.broadcast %92 : vector<1x256xf32> to vector<32x256xf32>
    %94 = arith.addf %85, %93 : vector<32x256xf32>
    %95 = arith.maximumf %84, %94 : vector<32x256xf32>
    %96 = arith.addf %1, %95 : vector<32x256xf32>
    %c18 = arith.constant 18 : index
    %c0_30 = arith.constant 0 : index
    %97 = vector.load %arg4[%c18, %c0_30] : memref<24x256xf32, #tpu.memory_space<vmem>>, vector<1x256xf32>
    %98 = vector.broadcast %97 : vector<1x256xf32> to vector<32x256xf32>
    %99 = arith.mulf %91, %98 : vector<32x256xf32>
    %100 = arith.addf %96, %99 : vector<32x256xf32>
    %c0_31 = arith.constant 0 : index
    %c0_32 = arith.constant 0 : index
    %c0_33 = arith.constant 0 : index
    %101 = vector.load %arg5[%c0_31, %c0_32, %c0_33] : memref<2x32x256xf32, #tpu.memory_space<vmem>>, vector<1x32x256xf32>
    %102 = vector.shape_cast %101 : vector<1x32x256xf32> to vector<32x256xf32>
    %103 = vector.shape_cast %100 : vector<32x256xf32> to vector<1x32x256xf32>
    tpu.vector_store %arg5[%c0_31, %c0_32, %c0_33], %103 {strides = array<i32>} : memref<2x32x256xf32, #tpu.memory_space<vmem>>, vector<1x32x256xf32>,
    %c1_34 = arith.constant 1 : index
    %c0_35 = arith.constant 0 : index
    %c0_36 = arith.constant 0 : index
    %104 = vector.load %arg1[%c1_34, %c0_35, %c0_36] : memref<2x32x256xf32, #tpu.memory_space<vmem>>, vector<1x32x256xf32>
    %105 = vector.shape_cast %104 : vector<1x32x256xf32> to vector<32x256xf32>
    %cst_37 = arith.constant 0.000000e+00 : f32
    %106 = vector.broadcast %cst_37 : f32 to vector<32x256xf32>
    %cst_38 = arith.constant -3.40282347E+38 : f32
    %107 = vector.broadcast %cst_38 : f32 to vector<32x256xf32>
    %c17_i32_39 = arith.constant 17 : i32
    %108 = tpu.dynamic_rotate %105 by %c17_i32_39 dim 1 : vector<32x256xf32>, i32 -> vector<32x256xf32>
    %c0_40 = arith.constant 0 : index
    %c0_41 = arith.constant 0 : index
    %109 = vector.load %arg4[%c0_40, %c0_41] : memref<24x256xf32, #tpu.memory_space<vmem>>, vector<1x256xf32>
    %110 = vector.broadcast %109 : vector<1x256xf32> to vector<32x256xf32>
    %111 = arith.mulf %108, %110 : vector<32x256xf32>
    %112 = arith.truncf %111 : vector<32x256xf32> to vector<32x256xbf16>
    %c0_42 = arith.constant 0 : index
    %c256_43 = arith.constant 256 : index
    %113 = vector.load %arg6[%c0_42, %c256_43] : memref<288x512xbf16, #tpu.memory_space<vmem>>, vector<32x256xbf16>
    tpu.vector_store %arg6[%c0_42, %c256_43], %112 {strides = array<i32>} : memref<288x512xbf16, #tpu.memory_space<vmem>>, vector<32x256xbf16>,
    %114 = arith.addf %106, %111 : vector<32x256xf32>
    %c9_44 = arith.constant 9 : index
    %c0_45 = arith.constant 0 : index
    %115 = vector.load %arg4[%c9_44, %c0_45] : memref<24x256xf32, #tpu.memory_space<vmem>>, vector<1x256xf32>
    %116 = vector.broadcast %115 : vector<1x256xf32> to vector<32x256xf32>
    %117 = arith.addf %108, %116 : vector<32x256xf32>
    %118 = arith.maximumf %107, %117 : vector<32x256xf32>
    %c16_i32_46 = arith.constant 16 : i32
    %119 = tpu.dynamic_rotate %105 by %c16_i32_46 dim 1 : vector<32x256xf32>, i32 -> vector<32x256xf32>
    %c1_47 = arith.constant 1 : index
    %c0_48 = arith.constant 0 : index
    %120 = vector.load %arg4[%c1_47, %c0_48] : memref<24x256xf32, #tpu.memory_space<vmem>>, vector<1x256xf32>
    %121 = vector.broadcast %120 : vector<1x256xf32> to vector<32x256xf32>
    %122 = arith.mulf %119, %121 : vector<32x256xf32>
    %123 = arith.truncf %122 : vector<32x256xf32> to vector<32x256xbf16>
    %c32_49 = arith.constant 32 : index
    %c256_50 = arith.constant 256 : index
    %124 = vector.load %arg6[%c32_49, %c256_50] : memref<288x512xbf16, #tpu.memory_space<vmem>>, vector<32x256xbf16>
    tpu.vector_store %arg6[%c32_49, %c256_50], %123 {strides = array<i32>} : memref<288x512xbf16, #tpu.memory_space<vmem>>, vector<32x256xbf16>,
    %125 = arith.addf %114, %122 : vector<32x256xf32>
    %c10_51 = arith.constant 10 : index
    %c0_52 = arith.constant 0 : index
    %126 = vector.load %arg4[%c10_51, %c0_52] : memref<24x256xf32, #tpu.memory_space<vmem>>, vector<1x256xf32>
    %127 = vector.broadcast %126 : vector<1x256xf32> to vector<32x256xf32>
    %128 = arith.addf %119, %127 : vector<32x256xf32>
    %129 = arith.maximumf %118, %128 : vector<32x256xf32>
    %c15_i32_53 = arith.constant 15 : i32
    %130 = tpu.dynamic_rotate %105 by %c15_i32_53 dim 1 : vector<32x256xf32>, i32 -> vector<32x256xf32>
    %c2_54 = arith.constant 2 : index
    %c0_55 = arith.constant 0 : index
    %131 = vector.load %arg4[%c2_54, %c0_55] : memref<24x256xf32, #tpu.memory_space<vmem>>, vector<1x256xf32>
    %132 = vector.broadcast %131 : vector<1x256xf32> to vector<32x256xf32>
    %133 = arith.mulf %130, %132 : vector<32x256xf32>
    %134 = arith.truncf %133 : vector<32x256xf32> to vector<32x256xbf16>
    %c64_56 = arith.constant 64 : index
    %c256_57 = arith.constant 256 : index
    %135 = vector.load %arg6[%c64_56, %c256_57] : memref<288x512xbf16, #tpu.memory_space<vmem>>, vector<32x256xbf16>
    tpu.vector_store %arg6[%c64_56, %c256_57], %134 {strides = array<i32>} : memref<288x512xbf16, #tpu.memory_space<vmem>>, vector<32x256xbf16>,
    %136 = arith.addf %125, %133 : vector<32x256xf32>
    %c11_58 = arith.constant 11 : index
    %c0_59 = arith.constant 0 : index
    %137 = vector.load %arg4[%c11_58, %c0_59] : memref<24x256xf32, #tpu.memory_space<vmem>>, vector<1x256xf32>
    %138 = vector.broadcast %137 : vector<1x256xf32> to vector<32x256xf32>
    %139 = arith.addf %130, %138 : vector<32x256xf32>
    %140 = arith.maximumf %129, %139 : vector<32x256xf32>
    %c1_i32_60 = arith.constant 1 : i32
    %141 = tpu.dynamic_rotate %105 by %c1_i32_60 dim 1 : vector<32x256xf32>, i32 -> vector<32x256xf32>
    %c3_61 = arith.constant 3 : index
    %c0_62 = arith.constant 0 : index
    %142 = vector.load %arg4[%c3_61, %c0_62] : memref<24x256xf32, #tpu.memory_space<vmem>>, vector<1x256xf32>
    %143 = vector.broadcast %142 : vector<1x256xf32> to vector<32x256xf32>
    %144 = arith.mulf %141, %143 : vector<32x256xf32>
    %145 = arith.truncf %144 : vector<32x256xf32> to vector<32x256xbf16>
    %c96_63 = arith.constant 96 : index
    %c256_64 = arith.constant 256 : index
    %146 = vector.load %arg6[%c96_63, %c256_64] : memref<288x512xbf16, #tpu.memory_space<vmem>>, vector<32x256xbf16>
    tpu.vector_store %arg6[%c96_63, %c256_64], %145 {strides = array<i32>} : memref<288x512xbf16, #tpu.memory_space<vmem>>, vector<32x256xbf16>,
    %147 = arith.addf %136, %144 : vector<32x256xf32>
    %c12_65 = arith.constant 12 : index
    %c0_66 = arith.constant 0 : index
    %148 = vector.load %arg4[%c12_65, %c0_66] : memref<24x256xf32, #tpu.memory_space<vmem>>, vector<1x256xf32>
    %149 = vector.broadcast %148 : vector<1x256xf32> to vector<32x256xf32>
    %150 = arith.addf %141, %149 : vector<32x256xf32>
    %151 = arith.maximumf %140, %150 : vector<32x256xf32>
    %152 = arith.truncf %105 : vector<32x256xf32> to vector<32x256xbf16>
    %c128_67 = arith.constant 128 : index
    %c256_68 = arith.constant 256 : index
    %153 = vector.load %arg6[%c128_67, %c256_68] : memref<288x512xbf16, #tpu.memory_space<vmem>>, vector<32x256xbf16>
    tpu.vector_store %arg6[%c128_67, %c256_68], %152 {strides = array<i32>} : memref<288x512xbf16, #tpu.memory_space<vmem>>, vector<32x256xbf16>,
    %154 = arith.addf %147, %105 : vector<32x256xf32>
    %155 = arith.maximumf %151, %105 : vector<32x256xf32>
    %c255_i32_69 = arith.constant 255 : i32
    %156 = tpu.dynamic_rotate %105 by %c255_i32_69 dim 1 : vector<32x256xf32>, i32 -> vector<32x256xf32>
    %c5_70 = arith.constant 5 : index
    %c0_71 = arith.constant 0 : index
    %157 = vector.load %arg4[%c5_70, %c0_71] : memref<24x256xf32, #tpu.memory_space<vmem>>, vector<1x256xf32>
    %158 = vector.broadcast %157 : vector<1x256xf32> to vector<32x256xf32>
    %159 = arith.mulf %156, %158 : vector<32x256xf32>
    %160 = arith.truncf %159 : vector<32x256xf32> to vector<32x256xbf16>
    %c160_72 = arith.constant 160 : index
    %c256_73 = arith.constant 256 : index
    %161 = vector.load %arg6[%c160_72, %c256_73] : memref<288x512xbf16, #tpu.memory_space<vmem>>, vector<32x256xbf16>
    tpu.vector_store %arg6[%c160_72, %c256_73], %160 {strides = array<i32>} : memref<288x512xbf16, #tpu.memory_space<vmem>>, vector<32x256xbf16>,
    %162 = arith.addf %154, %159 : vector<32x256xf32>
    %c14_74 = arith.constant 14 : index
    %c0_75 = arith.constant 0 : index
    %163 = vector.load %arg4[%c14_74, %c0_75] : memref<24x256xf32, #tpu.memory_space<vmem>>, vector<1x256xf32>
    %164 = vector.broadcast %163 : vector<1x256xf32> to vector<32x256xf32>
    %165 = arith.addf %156, %164 : vector<32x256xf32>
    %166 = arith.maximumf %155, %165 : vector<32x256xf32>
    %c241_i32_76 = arith.constant 241 : i32
    %167 = tpu.dynamic_rotate %105 by %c241_i32_76 dim 1 : vector<32x256xf32>, i32 -> vector<32x256xf32>
    %c6_77 = arith.constant 6 : index
    %c0_78 = arith.constant 0 : index
    %168 = vector.load %arg4[%c6_77, %c0_78] : memref<24x256xf32, #tpu.memory_space<vmem>>, vector<1x256xf32>
    %169 = vector.broadcast %168 : vector<1x256xf32> to vector<32x256xf32>
    %170 = arith.mulf %167, %169 : vector<32x256xf32>
    %171 = arith.truncf %170 : vector<32x256xf32> to vector<32x256xbf16>
    %c192_79 = arith.constant 192 : index
    %c256_80 = arith.constant 256 : index
    %172 = vector.load %arg6[%c192_79, %c256_80] : memref<288x512xbf16, #tpu.memory_space<vmem>>, vector<32x256xbf16>
    tpu.vector_store %arg6[%c192_79, %c256_80], %171 {strides = array<i32>} : memref<288x512xbf16, #tpu.memory_space<vmem>>, vector<32x256xbf16>,
    %173 = arith.addf %162, %170 : vector<32x256xf32>
    %c15_81 = arith.constant 15 : index
    %c0_82 = arith.constant 0 : index
    %174 = vector.load %arg4[%c15_81, %c0_82] : memref<24x256xf32, #tpu.memory_space<vmem>>, vector<1x256xf32>
    %175 = vector.broadcast %174 : vector<1x256xf32> to vector<32x256xf32>
    %176 = arith.addf %167, %175 : vector<32x256xf32>
    %177 = arith.maximumf %166, %176 : vector<32x256xf32>
    %c240_i32_83 = arith.constant 240 : i32
    %178 = tpu.dynamic_rotate %105 by %c240_i32_83 dim 1 : vector<32x256xf32>, i32 -> vector<32x256xf32>
    %c7_84 = arith.constant 7 : index
    %c0_85 = arith.constant 0 : index
    %179 = vector.load %arg4[%c7_84, %c0_85] : memref<24x256xf32, #tpu.memory_space<vmem>>, vector<1x256xf32>
    %180 = vector.broadcast %179 : vector<1x256xf32> to vector<32x256xf32>
    %181 = arith.mulf %178, %180 : vector<32x256xf32>
    %182 = arith.truncf %181 : vector<32x256xf32> to vector<32x256xbf16>
    %c224_86 = arith.constant 224 : index
    %c256_87 = arith.constant 256 : index
    %183 = vector.load %arg6[%c224_86, %c256_87] : memref<288x512xbf16, #tpu.memory_space<vmem>>, vector<32x256xbf16>
    tpu.vector_store %arg6[%c224_86, %c256_87], %182 {strides = array<i32>} : memref<288x512xbf16, #tpu.memory_space<vmem>>, vector<32x256xbf16>,
    %184 = arith.addf %173, %181 : vector<32x256xf32>
    %c16_88 = arith.constant 16 : index
    %c0_89 = arith.constant 0 : index
    %185 = vector.load %arg4[%c16_88, %c0_89] : memref<24x256xf32, #tpu.memory_space<vmem>>, vector<1x256xf32>
    %186 = vector.broadcast %185 : vector<1x256xf32> to vector<32x256xf32>
    %187 = arith.addf %178, %186 : vector<32x256xf32>
    %188 = arith.maximumf %177, %187 : vector<32x256xf32>
    %c239_i32_90 = arith.constant 239 : i32
    %189 = tpu.dynamic_rotate %105 by %c239_i32_90 dim 1 : vector<32x256xf32>, i32 -> vector<32x256xf32>
    %c8_91 = arith.constant 8 : index
    %c0_92 = arith.constant 0 : index
    %190 = vector.load %arg4[%c8_91, %c0_92] : memref<24x256xf32, #tpu.memory_space<vmem>>, vector<1x256xf32>
    %191 = vector.broadcast %190 : vector<1x256xf32> to vector<32x256xf32>
    %192 = arith.mulf %189, %191 : vector<32x256xf32>
    %193 = arith.truncf %192 : vector<32x256xf32> to vector<32x256xbf16>
    %c256_93 = arith.constant 256 : index
    %c256_94 = arith.constant 256 : index
    %194 = vector.load %arg6[%c256_93, %c256_94] : memref<288x512xbf16, #tpu.memory_space<vmem>>, vector<32x256xbf16>
    tpu.vector_store %arg6[%c256_93, %c256_94], %193 {strides = array<i32>} : memref<288x512xbf16, #tpu.memory_space<vmem>>, vector<32x256xbf16>,
    %195 = arith.addf %184, %192 : vector<32x256xf32>
    %c17_95 = arith.constant 17 : index
    %c0_96 = arith.constant 0 : index
    %196 = vector.load %arg4[%c17_95, %c0_96] : memref<24x256xf32, #tpu.memory_space<vmem>>, vector<1x256xf32>
    %197 = vector.broadcast %196 : vector<1x256xf32> to vector<32x256xf32>
    %198 = arith.addf %189, %197 : vector<32x256xf32>
    %199 = arith.maximumf %188, %198 : vector<32x256xf32>
    %200 = arith.addf %105, %199 : vector<32x256xf32>
    %c18_97 = arith.constant 18 : index
    %c0_98 = arith.constant 0 : index
    %201 = vector.load %arg4[%c18_97, %c0_98] : memref<24x256xf32, #tpu.memory_space<vmem>>, vector<1x256xf32>
    %202 = vector.broadcast %201 : vector<1x256xf32> to vector<32x256xf32>
    %203 = arith.mulf %195, %202 : vector<32x256xf32>
    %204 = arith.addf %200, %203 : vector<32x256xf32>
    %c1_99 = arith.constant 1 : index
    %c0_100 = arith.constant 0 : index
    %c0_101 = arith.constant 0 : index
    %205 = vector.load %arg5[%c1_99, %c0_100, %c0_101] : memref<2x32x256xf32, #tpu.memory_space<vmem>>, vector<1x32x256xf32>
    %206 = vector.shape_cast %205 : vector<1x32x256xf32> to vector<32x256xf32>
    %207 = vector.shape_cast %204 : vector<32x256xf32> to vector<1x32x256xf32>
    tpu.vector_store %arg5[%c1_99, %c0_100, %c0_101], %207 {strides = array<i32>} : memref<2x32x256xf32, #tpu.memory_space<vmem>>, vector<1x32x256xf32>,
    %c0_102 = arith.constant 0 : index
    %c0_103 = arith.constant 0 : index
    %208 = vector.load %arg2[%c0_102, %c0_103] : memref<32x288xbf16, #tpu.memory_space<vmem>>, vector<32x288xbf16>
    %c0_104 = arith.constant 0 : index
    %c0_105 = arith.constant 0 : index
    %209 = vector.load %arg6[%c0_104, %c0_105] : memref<288x512xbf16, #tpu.memory_space<vmem>>, vector<288x512xbf16>
    %cst_106 = arith.constant dense<0.000000e+00> : vector<32x512xf32>
    %210 = tpu.matmul %208, %209, %cst_106 {dimension_numbers = #tpu.dot_dimension_numbers<[1], [0], [0], [1], [0, 0, 1, 1], [], []>} : vector<32x288xbf16>, vector<288x512xbf16>, vector<32x512xf32> -> vector<32x512xf32>
    %c0_107 = arith.constant 0 : index
    %c0_108 = arith.constant 0 : index
    %211 = vector.load %arg3[%c0_107, %c0_108] : memref<32x2xf32, #tpu.memory_space<vmem>>, vector<32x1xf32>
    %212 = vector.broadcast %211 : vector<32x1xf32> to vector<32x512xf32>
    %213 = arith.mulf %210, %212 : vector<32x512xf32>
    %c0_109 = arith.constant 0 : index
    %c1_110 = arith.constant 1 : index
    %214 = vector.load %arg3[%c0_109, %c1_110] : memref<32x2xf32, #tpu.memory_space<vmem>>, vector<32x1xf32>
    %215 = vector.broadcast %214 : vector<32x1xf32> to vector<32x512xf32>
    %216 = arith.addf %213, %215 : vector<32x512xf32>
    %cst_111 = arith.constant -1.000000e+00 : f32
    %cst_112 = arith.constant 1.000000e+00 : f32
    %217 = vector.broadcast %cst_111 : f32 to vector<32x512xf32>
    %218 = arith.maximumf %217, %216 : vector<32x512xf32>
    %219 = vector.broadcast %cst_112 : f32 to vector<32x512xf32>
    %220 = arith.minimumf %219, %218 : vector<32x512xf32>
    %221 = vector.extract_strided_slice %220 {offsets = [0, 0], sizes = [32, 256], strides = [1, 1]} : vector<32x512xf32> to vector<32x256xf32>
    %c0_113 = arith.constant 0 : index
    %c0_114 = arith.constant 0 : index
    %c0_115 = arith.constant 0 : index
    %222 = vector.load %arg5[%c0_113, %c0_114, %c0_115] : memref<2x32x256xf32, #tpu.memory_space<vmem>>, vector<1x32x256xf32>
    %223 = vector.shape_cast %222 : vector<1x32x256xf32> to vector<32x256xf32>
    %224 = arith.addf %223, %221 : vector<32x256xf32>
    %c0_116 = arith.constant 0 : index
    %c0_117 = arith.constant 0 : index
    %c0_118 = arith.constant 0 : index
    %225 = vector.load %arg5[%c0_116, %c0_117, %c0_118] : memref<2x32x256xf32, #tpu.memory_space<vmem>>, vector<1x32x256xf32>
    %226 = vector.shape_cast %225 : vector<1x32x256xf32> to vector<32x256xf32>
    %227 = vector.shape_cast %224 : vector<32x256xf32> to vector<1x32x256xf32>
    tpu.vector_store %arg5[%c0_116, %c0_117, %c0_118], %227 {strides = array<i32>} : memref<2x32x256xf32, #tpu.memory_space<vmem>>, vector<1x32x256xf32>,
    %228 = vector.extract_strided_slice %220 {offsets = [0, 256], sizes = [32, 256], strides = [1, 1]} : vector<32x512xf32> to vector<32x256xf32>
    %c1_119 = arith.constant 1 : index
    %c0_120 = arith.constant 0 : index
    %c0_121 = arith.constant 0 : index
    %229 = vector.load %arg5[%c1_119, %c0_120, %c0_121] : memref<2x32x256xf32, #tpu.memory_space<vmem>>, vector<1x32x256xf32>
    %230 = vector.shape_cast %229 : vector<1x32x256xf32> to vector<32x256xf32>
    %231 = arith.addf %230, %228 : vector<32x256xf32>
    %c1_122 = arith.constant 1 : index
    %c0_123 = arith.constant 0 : index
    %c0_124 = arith.constant 0 : index
    %232 = vector.load %arg5[%c1_122, %c0_123, %c0_124] : memref<2x32x256xf32, #tpu.memory_space<vmem>>, vector<1x32x256xf32>
    %233 = vector.shape_cast %232 : vector<1x32x256xf32> to vector<32x256xf32>
    %234 = vector.shape_cast %231 : vector<32x256xf32> to vector<1x32x256xf32>
    tpu.vector_store %arg5[%c1_122, %c0_123, %c0_124], %234 {strides = array<i32>} : memref<2x32x256xf32, #tpu.memory_space<vmem>>, vector<1x32x256xf32>,
    return
  }
  func.func @transform_0(%arg0: i32) -> (i32, i32, i32) {
    %c0_i32 = arith.constant 0 : i32
    %c0_i32_0 = arith.constant 0 : i32
    %c0_i32_1 = arith.constant 0 : i32
    return %arg0, %c0_i32, %c0_i32_0 : i32, i32, i32
  }
  func.func @transform_1(%arg0: i32) -> (i32, i32) {
    %c0_i32 = arith.constant 0 : i32
    %c0_i32_0 = arith.constant 0 : i32
    %c0_i32_1 = arith.constant 0 : i32
    return %c0_i32, %c0_i32_0 : i32, i32
  }
  func.func @transform_2(%arg0: i32) -> (i32, i32) {
    %c0_i32 = arith.constant 0 : i32
    %c0_i32_0 = arith.constant 0 : i32
    %c0_i32_1 = arith.constant 0 : i32
    return %c0_i32, %c0_i32_0 : i32, i32
  }
  func.func @transform_3(%arg0: i32) -> (i32, i32) {
    %c0_i32 = arith.constant 0 : i32
    %c0_i32_0 = arith.constant 0 : i32
    %c0_i32_1 = arith.constant 0 : i32
    return %c0_i32, %c0_i32_0 : i32, i32
  }
  func.func @transform_4(%arg0: i32) -> (i32, i32, i32) {
    %c0_i32 = arith.constant 0 : i32
    %c0_i32_0 = arith.constant 0 : i32
    %c0_i32_1 = arith.constant 0 : i32
    return %arg0, %c0_i32, %c0_i32_0 : i32, i32, i32
  }
}

</mosaic_0001>

<llo_original>
// kernel: tpu_custom_call.1
$region0: #{tpu_custom_call.1}
  #allocation0 [shape = 'u32[]', space=smem, size = 0x4, offset = 0x4, fixed_abs, tag = 'smem constant byte address 0x4 - core index']
  #allocation1 [shape = 'u32[72,128]{1,0:T(1,128)}', space=vmem, size = 0x9000, scoped, tag = 'internal scratch']
  #allocation2 [shape = 'bf16[288,512]{1,0:T(8,128)(2,1)}', space=vmem, size = 0x48000, scoped, tag = 'scratch operand']
  %s0 = inlined_call_operand.hbm [shape: f32[4,32,256], index: 0, kind: input, shape index: {}]
  %s1 = inlined_call_operand.hbm [shape: bf16[32,288], index: 1, kind: input, shape index: {}]
  %s2 = inlined_call_operand.vmem [shape: f32[32,2], index: 2, kind: input, shape index: {}]
  %s3 = inlined_call_operand.hbm [shape: f32[24,256], index: 3, kind: input, shape index: {}]
  %s4 = inlined_call_operand.hbm [shape: f32[4,32,256], index: 4, kind: output, shape index: {}]
  %s5 = sld [smem:[#allocation0]]
  $region61: #{tpu_custom_call.1} parent=0
    _
  %s7 = ssub.s32 1, %s5
  %s8 = scalar_select 0, %s7, %s5
  $region1: #{tpu_custom_call.1} parent=0
    #allocation3 [shape = 'u8[131072]{0}', space=vmem, size = 0x20000, scoped, tag = 'input window, operand 0']
    #allocation4 [shape = 's32[2]{0}', space=sflag, size = 0x8, scoped, tag = 'scoped memory for tpu_custom_call.1']
    #allocation5 [shape = 's32[2]{0}', space=sflag, size = 0x8, scoped, tag = 'scoped memory for tpu_custom_call.1']
    #allocation6 [shape = 'u8[24576]{0}', space=vmem, size = 0x6000, scoped, tag = 'input window, operand 1, single buffered']
    #allocation7 [shape = 's32[1]{0}', space=sflag, size = 0x4, scoped, tag = 'scoped memory for tpu_custom_call.1']
    #allocation8 [shape = 'u8[24576]{0}', space=vmem, size = 0x6000, scoped, tag = 'input window, operand 3, single buffered']
    #allocation9 [shape = 'u8[131072]{0}', space=vmem, size = 0x20000, scoped, tag = 'output window, operand 0']
    %9 = vsyncpa [#allocation4], 0
    %s10 = scalar_lea.sflag [#allocation4], 1
    %11 = vsyncpa %s10, 0
    %12 = vsyncpa [#allocation7], 0
    %13 = vsyncpa [#allocation5], 0
    %s14 = scalar_lea.sflag [#allocation5], 1
    %15 = vsyncpa %s14, 0
    loop: start=0, step=1, limit=4
    $region2: #{tpu_custom_call.1} parent=1 // loop_pre_header
      _
    $region3: #{tpu_custom_call.1} parent=1 // loop_header
      %s17 = sphi 0, %s21
      %p18 = scmp.ge.s32.totalorder %s17, 4
      %s27 = sphi 0, %s29
      %s30 = sphi 0, %s27
      %s31 = sphi 0, %s30
      %s47 = sphi 0, %s31
      %s51 = sphi 0, %s51
      %s53 = sphi 0, %s51
      %s54 = sphi 0, %s53
      %s68 = sphi 0, %s54
      %s72 = sphi 0, %s72
      %s74 = sphi 0, %s72
      %s75 = sphi 0, %s74
      %s89 = sphi 0, %s75
      %s93 = sphi 0, %s93
      %s95 = sphi 0, %s93
      %s96 = sphi 0, %s95
      %s110 = sphi 0, %s96
      %s116 = sphi 0, %s118
      %s119 = sphi 0, %s116
      %s120 = sphi 0, %s119
      %s136 = sphi 0, %s120
    $region4: #{tpu_custom_call.1} parent=1 // loop_header_branch
      %20 = sbr.rel (%p18) target = $region8
    $region5: #{tpu_custom_call.1} parent=1 // loop_body
      %s22 = ssub.s32 %s17, 1
      %s23 = ssub.s32 %s17, 2
      %s24 = sadd.s32 %s17, 1
      %s25 = ssub.s32 %s17, %s24
      %p26 = scmp.eq.s32.totalorder %s25, 0
      %s28 = sadd.s32 %s27, 1
      %s29 = scalar_select %p26, %s27, %s28
      %p32 = pneg %p26
      %p33 = scmp.eq.s32.totalorder %s17, 1
      %p34 = por %p32, %p33
      %p35 = scmp.ne.s32.totalorder %s27, %s30
      %p36 = scmp.eq.s32.totalorder %s17, 0
      %p37 = por %p35, %p36
      %p38 = scmp.ne.s32.totalorder %s27, %s30
      %p39 = scmp.eq.s32.totalorder %s22, 1
      %p40 = por %p38, %p39
      %p41 = scmp.ne.s32.totalorder %s30, %s31
      %p42 = scmp.eq.s32.totalorder %s22, 0
      %p43 = por %p41, %p42
      %p44 = scmp.ne.s32.totalorder %s30, %s31
      %p45 = scmp.eq.s32.totalorder %s23, 1
      %p46 = por %p44, %p45
      %p48 = scmp.ne.s32.totalorder %s31, %s47
      %p49 = scmp.eq.s32.totalorder %s23, 0
      %p50 = por %p48, %p49
      %s52 = sadd.s32 %s51, 1
      %p55 = scmp.eq.s32.totalorder %s17, 1
      %p56 = scmp.ne.s32.totalorder %s51, %s53
      %p57 = scmp.eq.s32.totalorder %s17, 0
      %p58 = por %p56, %p57
      %p59 = scmp.ne.s32.totalorder %s51, %s53
      %p60 = scmp.eq.s32.totalorder %s22, 1
      %p61 = por %p59, %p60
      %p62 = scmp.ne.s32.totalorder %s53, %s54
      %p63 = scmp.eq.s32.totalorder %s22, 0
      %p64 = por %p62, %p63
      %p65 = scmp.ne.s32.totalorder %s53, %s54
      %p66 = scmp.eq.s32.totalorder %s23, 1
      %p67 = por %p65, %p66
      %p69 = scmp.ne.s32.totalorder %s54, %s68
      %p70 = scmp.eq.s32.totalorder %s23, 0
      %p71 = por %p69, %p70
      %s73 = sadd.s32 %s72, 1
      %p76 = scmp.eq.s32.totalorder %s17, 1
      %p77 = scmp.ne.s32.totalorder %s72, %s74
      %p78 = scmp.eq.s32.totalorder %s17, 0
      %p79 = por %p77, %p78
      %p80 = scmp.ne.s32.totalorder %s72, %s74
      %p81 = scmp.eq.s32.totalorder %s22, 1
      %p82 = por %p80, %p81
      %p83 = scmp.ne.s32.totalorder %s74, %s75
      %p84 = scmp.eq.s32.totalorder %s22, 0
      %p85 = por %p83, %p84
      %p86 = scmp.ne.s32.totalorder %s74, %s75
      %p87 = scmp.eq.s32.totalorder %s23, 1
      %p88 = por %p86, %p87
      %p90 = scmp.ne.s32.totalorder %s75, %s89
      %p91 = scmp.eq.s32.totalorder %s23, 0
      %p92 = por %p90, %p91
      %s94 = sadd.s32 %s93, 1
      %p97 = scmp.eq.s32.totalorder %s17, 1
      %p98 = scmp.ne.s32.totalorder %s93, %s95
      %p99 = scmp.eq.s32.totalorder %s17, 0
      %p100 = por %p98, %p99
      %p101 = scmp.ne.s32.totalorder %s93, %s95
      %p102 = scmp.eq.s32.totalorder %s22, 1
      %p103 = por %p101, %p102
      %p104 = scmp.ne.s32.totalorder %s95, %s96
      %p105 = scmp.eq.s32.totalorder %s22, 0
      %p106 = por %p104, %p105
      %p107 = scmp.ne.s32.totalorder %s95, %s96
      %p108 = scmp.eq.s32.totalorder %s23, 1
      %p109 = por %p107, %p108
      %p111 = scmp.ne.s32.totalorder %s96, %s110
      %p112 = scmp.eq.s32.totalorder %s23, 0
      %p113 = por %p111, %p112
      %s114 = ssub.s32 %s17, %s24
      %p115 = scmp.eq.s32.totalorder %s114, 0
      %s117 = sadd.s32 %s116, 1
      %s118 = scalar_select %p115, %s116, %s117
      %p121 = pneg %p115
      %p122 = scmp.eq.s32.totalorder %s17, 1
      %p123 = por %p121, %p122
      %p124 = scmp.ne.s32.totalorder %s116, %s119
      %p125 = scmp.eq.s32.totalorder %s17, 0
      %p126 = por %p124, %p125
      %p127 = scmp.ne.s32.totalorder %s116, %s119
      %p128 = scmp.eq.s32.totalorder %s22, 1
      %p129 = por %p127, %p128
      %p130 = scmp.ne.s32.totalorder %s119, %s120
      %p131 = scmp.eq.s32.totalorder %s22, 0
      %p132 = por %p130, %p131
      %p133 = scmp.ne.s32.totalorder %s119, %s120
      %p134 = scmp.eq.s32.totalorder %s23, 1
      %p135 = por %p133, %p134
      %p137 = scmp.ne.s32.totalorder %s120, %s136
      %p138 = scmp.eq.s32.totalorder %s23, 0
      %p139 = por %p137, %p138
      %p140 = scmp.le.s32.totalorder 1, %s17
      %p141 = scmp.lt.s32.totalorder %s17, 3
      %p142 = pnand %p140, %p141
      %p143 = pneg %p142
      // Predicated region
      $region9: #{tpu_custom_call.1} parent=5 // pred_check
        _
      $region10: #{tpu_custom_call.1} parent=5 // pred_check_branch
        %145 = sbr.rel (%p142) target = $region12
      $region11: #{tpu_custom_call.1} parent=5 // pred_region
        %s146 = ssub.s32 %s17, 1
        // Predicated region
        $region13: #{tpu_custom_call.1} parent=11 // pred_check
          %p147 = pneg %p64
        $region14: #{tpu_custom_call.1} parent=11 // pred_check_branch
          %149 = sbr.rel (%p147) target = $region16
        $region15: #{tpu_custom_call.1} parent=11 // pred_region
          %151 = vsyncadd [#allocation7], 0
          %s152 = sshll.u32 %s1, 4
          %s153 = int_to_ptr.hbm [resolvable:$true] %s152
          %s154 = sshll.u32 [#allocation6], 4
          %s155 = int_to_ptr.vmem [resolvable:$true] %s154
          %160 = dma.hbm_to_vmem [thread:$0]  %s153, 768, %s155, [#allocation7], 192, 192, 12
        $region16: #{tpu_custom_call.1} parent=11 // pred_fallthru
          _
        // Predicated region
        $region17: #{tpu_custom_call.1} parent=11 // pred_check
          %p161 = pneg %p85
        $region18: #{tpu_custom_call.1} parent=11 // pred_check_branch
          %163 = sbr.rel (%p161) target = $region20
        $region19: #{tpu_custom_call.1} parent=11 // pred_region
          _
        $region20: #{tpu_custom_call.1} parent=11 // pred_fallthru
          _
        // Predicated region
        $region21: #{tpu_custom_call.1} parent=11 // pred_check
          %p164 = pneg %p106
        $region22: #{tpu_custom_call.1} parent=11 // pred_check_branch
          %166 = sbr.rel (%p164) target = $region24
        $region23: #{tpu_custom_call.1} parent=11 // pred_region
          %168 = vsyncadd [#allocation7], 0
          %s169 = sshll.u32 %s3, 4
          %s170 = int_to_ptr.hbm [resolvable:$true] %s169
          %s171 = sshll.u32 [#allocation8], 4
          %s172 = int_to_ptr.vmem [resolvable:$true] %s171
          %177 = dma.hbm_to_vmem [thread:$0]  %s170, 768, %s172, [#allocation7], 256, 256, 16
        $region24: #{tpu_custom_call.1} parent=11 // pred_fallthru
          _
      $region12: #{tpu_custom_call.1} parent=5 // pred_fallthru
        _
      %p178 = scmp.lt.s32.totalorder %s17, 2
      // Predicated region
      $region25: #{tpu_custom_call.1} parent=5 // pred_check
        %p179 = pneg %p178
      $region26: #{tpu_custom_call.1} parent=5 // pred_check_branch
        %181 = sbr.rel (%p179) target = $region28
      $region27: #{tpu_custom_call.1} parent=5 // pred_region
        // Predicated region
        $region29: #{tpu_custom_call.1} parent=27 // pred_check
          %p182 = pneg %p37
        $region30: #{tpu_custom_call.1} parent=27 // pred_check_branch
          %184 = sbr.rel (%p182) target = $region32
        $region31: #{tpu_custom_call.1} parent=27 // pred_region
          %s185 = sand.u32 %s27, 1
          %s186 = scalar_lea.sflag [#allocation4], %s185
          %s187 = sand.u32 %s27, 1
          %s188 = smul.addr %s187, 128
          %s189 = scalar_lea.vmem [#allocation3], %s188
          %s190 = smul.u32 2, %s17
          %192 = vsyncadd %s186, 0
          %s193 = smul.addr %s190, 8
          %s194 = smul.addr %s193, 8
          %s195 = scalar_lea.hbm %s0, %s194
          %s196 = sshll.u32 %s195, 4
          %s197 = int_to_ptr.hbm [resolvable:$true] %s196
          %s198 = sshll.u32 %s189, 4
          %s199 = int_to_ptr.vmem [resolvable:$true] %s198
          %204 = dma.hbm_to_vmem [thread:$0]  %s197, 2048, %s199, %s186, 256, 256, 16
        $region32: #{tpu_custom_call.1} parent=27 // pred_fallthru
          _
      $region28: #{tpu_custom_call.1} parent=5 // pred_fallthru
        _
      %p205 = scmp.le.s32.totalorder 1, %s17
      %p206 = scmp.lt.s32.totalorder %s17, 3
      %p207 = pnand %p205, %p206
      %p208 = pneg %p207
      // Predicated region
      $region33: #{tpu_custom_call.1} parent=5 // pred_check
        _
      $region34: #{tpu_custom_call.1} parent=5 // pred_check_branch
        %210 = sbr.rel (%p207) target = $region36
      $region35: #{tpu_custom_call.1} parent=5 // pred_region
        %s211 = ssub.s32 %s17, 1
        %s212 = sand.u32 %s30, 1
        %s213 = scalar_lea.sflag [#allocation4], %s212
        %s214 = sand.u32 %s30, 1
        %s215 = smul.addr %s214, 128
        %s216 = scalar_lea.vmem [#allocation3], %s215
        // Predicated region
        $region37: #{tpu_custom_call.1} parent=35 // pred_check
          %p217 = pneg %p43
        $region38: #{tpu_custom_call.1} parent=35 // pred_check_branch
          %219 = sbr.rel (%p217) target = $region40
        $region39: #{tpu_custom_call.1} parent=35 // pred_region
          %221 = dma.done %s213, 2048
        $region40: #{tpu_custom_call.1} parent=35 // pred_fallthru
          _
        // Predicated region
        $region41: #{tpu_custom_call.1} parent=35 // pred_check
          %p222 = pneg %p64
        $region42: #{tpu_custom_call.1} parent=35 // pred_check_branch
          %224 = sbr.rel (%p222) target = $region44
        $region43: #{tpu_custom_call.1} parent=35 // pred_region
          %226 = dma.done [#allocation7], 768
        $region44: #{tpu_custom_call.1} parent=35 // pred_fallthru
          _
        // Predicated region
        $region45: #{tpu_custom_call.1} parent=35 // pred_check
          %p227 = pneg %p106
        $region46: #{tpu_custom_call.1} parent=35 // pred_check_branch
          %229 = sbr.rel (%p227) target = $region48
        $region47: #{tpu_custom_call.1} parent=35 // pred_region
          %231 = dma.done [#allocation7], 768
        $region48: #{tpu_custom_call.1} parent=35 // pred_fallthru
          _
        %s232 = sand.u32 %s30, 1
        %s233 = scalar_lea.sflag [#allocation4], %s232
        %s234 = sand.u32 %s30, 1
        %s235 = smul.addr %s234, 128
        %s236 = scalar_lea.vmem [#allocation3], %s235
        %p237 = pneg %p43
        %p238 = pneg %p40
        %p239 = pneg %p64
        %p240 = pneg %p61
        %p241 = pneg %p85
        %p242 = pneg %p82
        %p243 = pneg %p106
        %p244 = pneg %p103
        %p245 = pneg %p132
        %p246 = pneg %p129
        %s247 = sand.u32 %s119, 1
        %s248 = scalar_lea.sflag [#allocation5], %s247
        %s249 = sand.u32 %s119, 1
        %s250 = smul.addr %s249, 128
        %s251 = scalar_lea.vmem [#allocation9], %s250
        %s252 = smul.u32 2, %s22
        %s253 = smul.u32 2, %s22
        %v255 = vld [vmem:[%s216] sm:$0xff]
        %v256 = vld [vmem:[%s216 + $0x8] sm:$0xff]
        %v257 = vld [vmem:[%s216 + $0x10] sm:$0xff]
        %v258 = vld [vmem:[%s216 + $0x18] sm:$0xff]
        %v259 = vld [vmem:[%s216 + $0x20] sm:$0xff]
        %v260 = vld [vmem:[%s216 + $0x28] sm:$0xff]
        %v261 = vld [vmem:[%s216 + $0x30] sm:$0xff]
        %v262 = vld [vmem:[%s216 + $0x38] sm:$0xff]
        %263 = vrot.lane.b32.xlu0 %v255, 17
        %v264 = vpop.permute.xlu0 %263
        %265 = vrot.lane.b32.xlu0 %v257, 17
        %v266 = vpop.permute.xlu0 %265
        %267 = vrot.lane.b32.xlu0 %v259, 17
        %v268 = vpop.permute.xlu0 %267
        %269 = vrot.lane.b32.xlu0 %v261, 17
        %v270 = vpop.permute.xlu0 %269
        %271 = vrot.lane.b32.xlu0 %v256, 17
        %v272 = vpop.permute.xlu0 %271
        %273 = vrot.lane.b32.xlu0 %v258, 17
        %v274 = vpop.permute.xlu0 %273
        %275 = vrot.lane.b32.xlu0 %v260, 17
        %v276 = vpop.permute.xlu0 %275
        %277 = vrot.lane.b32.xlu0 %v262, 17
        %v278 = vpop.permute.xlu0 %277
        %v279 = vlaneseq
        %v280 = vand.u32 %v279, 127
        %vm281 = vcmp.lt.s32.totalorder %v280, 17
        %v282 = vsel %vm281, %v264, %v272
        %v283 = vsel %vm281, %v266, %v274
        %v284 = vsel %vm281, %v268, %v276
        %v285 = vsel %vm281, %v270, %v278
        %v286 = vsel %vm281, %v272, %v264
        %v287 = vsel %vm281, %v274, %v266
        %v288 = vsel %vm281, %v276, %v268
        %v289 = vsel %vm281, %v278, %v270
        %v290 = vld [vmem:[#allocation8] ss:$8 sm:$0x3]
        %v292 = vperm.slane %v290, 0
        %v293 = vperm.slane %v290, 1
        %v296 = vmul.f32 %v286, %v292
        %v297 = vmul.f32 %v282, %v293
        %v298 = vmul.f32 %v287, %v292
        %v299 = vmul.f32 %v283, %v293
        %v300 = vmul.f32 %v288, %v292
        %v301 = vmul.f32 %v284, %v293
        %v302 = vmul.f32 %v289, %v292
        %v303 = vmul.f32 %v285, %v293
        %v304 = vpack.c.bf16 %v297, %v296
        %v305 = vpack.c.bf16 %v299, %v298
        %v306 = vpack.c.bf16 %v301, %v300
        %v307 = vpack.c.bf16 %v303, %v302
        %308 = vst [vmem:[#allocation2] sm:$0xff] %v304
        %309 = vst [vmem:[#allocation2 + $0x10] sm:$0xff] %v305
        %310 = vst [vmem:[#allocation2 + $0x20] sm:$0xff] %v306
        %311 = vst [vmem:[#allocation2 + $0x30] sm:$0xff] %v307
        %v312 = vadd.f32 %v296, 0.0
        %v313 = vadd.f32 %v297, 0.0
        %v314 = vadd.f32 %v298, 0.0
        %v315 = vadd.f32 %v299, 0.0
        %v316 = vadd.f32 %v300, 0.0
        %v317 = vadd.f32 %v301, 0.0
        %v318 = vadd.f32 %v302, 0.0
        %v319 = vadd.f32 %v303, 0.0
        %s320 = scalar_lea.vmem [#allocation8], 17
        %v321 = vld [vmem:[%s320] ss:$8 sm:$0x3]
        %v323 = vperm.slane %v321, 0
        %v324 = vperm.slane %v321, 1
        %v327 = vadd.f32 %v286, %v323
        %v328 = vadd.f32 %v282, %v324
        %v329 = vadd.f32 %v287, %v323
        %v330 = vadd.f32 %v283, %v324
        %v331 = vadd.f32 %v288, %v323
        %v332 = vadd.f32 %v284, %v324
        %v333 = vadd.f32 %v289, %v323
        %v334 = vadd.f32 %v285, %v324
        %v335 = vmax.f32 %v327, -3.4028235e+38
        %v336 = vmax.f32 %v328, -3.4028235e+38
        %v337 = vmax.f32 %v329, -3.4028235e+38
        %v338 = vmax.f32 %v330, -3.4028235e+38
        %v339 = vmax.f32 %v331, -3.4028235e+38
        %v340 = vmax.f32 %v332, -3.4028235e+38
        %v341 = vmax.f32 %v333, -3.4028235e+38
        %v342 = vmax.f32 %v334, -3.4028235e+38
        %343 = vrot.lane.b32.xlu0 %v255, 16
        %v344 = vpop.permute.xlu0 %343
        %345 = vrot.lane.b32.xlu0 %v257, 16
        %v346 = vpop.permute.xlu0 %345
        %347 = vrot.lane.b32.xlu0 %v259, 16
        %v348 = vpop.permute.xlu0 %347
        %349 = vrot.lane.b32.xlu0 %v261, 16
        %v350 = vpop.permute.xlu0 %349
        %351 = vrot.lane.b32.xlu0 %v256, 16
        %v352 = vpop.permute.xlu0 %351
        %353 = vrot.lane.b32.xlu0 %v258, 16
        %v354 = vpop.permute.xlu0 %353
        %355 = vrot.lane.b32.xlu0 %v260, 16
        %v356 = vpop.permute.xlu0 %355
        %357 = vrot.lane.b32.xlu0 %v262, 16
        %v358 = vpop.permute.xlu0 %357
        %vm359 = vcmp.lt.s32.totalorder %v280, 16
        %v360 = vsel %vm359, %v344, %v352
        %v361 = vsel %vm359, %v346, %v354
        %v362 = vsel %vm359, %v348, %v356
        %v363 = vsel %vm359, %v350, %v358
        %v364 = vsel %vm359, %v352, %v344
        %v365 = vsel %vm359, %v354, %v346
        %v366 = vsel %vm359, %v356, %v348
        %v367 = vsel %vm359, %v358, %v350
        %s368 = scalar_lea.vmem [#allocation8], 1
        %v369 = vld [vmem:[%s368] ss:$8 sm:$0x3]
        %v371 = vperm.slane %v369, 0
        %v372 = vperm.slane %v369, 1
        %v375 = vmul.f32 %v364, %v371
        %v376 = vmul.f32 %v360, %v372
        %v377 = vmul.f32 %v365, %v371
        %v378 = vmul.f32 %v361, %v372
        %v379 = vmul.f32 %v366, %v371
        %v380 = vmul.f32 %v362, %v372
        %v381 = vmul.f32 %v367, %v371
        %v382 = vmul.f32 %v363, %v372
        %v383 = vpack.c.bf16 %v376, %v375
        %v384 = vpack.c.bf16 %v378, %v377
        %v385 = vpack.c.bf16 %v380, %v379
        %v386 = vpack.c.bf16 %v382, %v381
        %387 = vst [vmem:[#allocation2 + $0x40] sm:$0xff] %v383
        %388 = vst [vmem:[#allocation2 + $0x50] sm:$0xff] %v384
        %389 = vst [vmem:[#allocation2 + $0x60] sm:$0xff] %v385
        %390 = vst [vmem:[#allocation2 + $0x70] sm:$0xff] %v386
        %v391 = vadd.f32 %v312, %v375
        %v392 = vadd.f32 %v313, %v376
        %v393 = vadd.f32 %v314, %v377
        %v394 = vadd.f32 %v315, %v378
        %v395 = vadd.f32 %v316, %v379
        %v396 = vadd.f32 %v317, %v380
        %v397 = vadd.f32 %v318, %v381
        %v398 = vadd.f32 %v319, %v382
        %s399 = scalar_lea.vmem [#allocation8], 18
        %v400 = vld [vmem:[%s399] ss:$8 sm:$0x3]
        %v402 = vperm.slane %v400, 0
        %v403 = vperm.slane %v400, 1
        %v406 = vadd.f32 %v364, %v402
        %v407 = vadd.f32 %v360, %v403
        %v408 = vadd.f32 %v365, %v402
        %v409 = vadd.f32 %v361, %v403
        %v410 = vadd.f32 %v366, %v402
        %v411 = vadd.f32 %v362, %v403
        %v412 = vadd.f32 %v367, %v402
        %v413 = vadd.f32 %v363, %v403
        %v414 = vmax.f32 %v335, %v406
        %v415 = vmax.f32 %v336, %v407
        %v416 = vmax.f32 %v337, %v408
        %v417 = vmax.f32 %v338, %v409
        %v418 = vmax.f32 %v339, %v410
        %v419 = vmax.f32 %v340, %v411
        %v420 = vmax.f32 %v341, %v412
        %v421 = vmax.f32 %v342, %v413
        %422 = vrot.lane.b32.xlu0 %v255, 15
        %v423 = vpop.permute.xlu0 %422
        %424 = vrot.lane.b32.xlu0 %v257, 15
        %v425 = vpop.permute.xlu0 %424
        %426 = vrot.lane.b32.xlu0 %v259, 15
        %v427 = vpop.permute.xlu0 %426
        %428 = vrot.lane.b32.xlu0 %v261, 15
        %v429 = vpop.permute.xlu0 %428
        %430 = vrot.lane.b32.xlu0 %v256, 15
        %v431 = vpop.permute.xlu0 %430
        %432 = vrot.lane.b32.xlu0 %v258, 15
        %v433 = vpop.permute.xlu0 %432
        %434 = vrot.lane.b32.xlu0 %v260, 15
        %v435 = vpop.permute.xlu0 %434
        %436 = vrot.lane.b32.xlu0 %v262, 15
        %v437 = vpop.permute.xlu0 %436
        %vm438 = vcmp.lt.s32.totalorder %v280, 15
        %v439 = vsel %vm438, %v423, %v431
        %v440 = vsel %vm438, %v425, %v433
        %v441 = vsel %vm438, %v427, %v435
        %v442 = vsel %vm438, %v429, %v437
        %v443 = vsel %vm438, %v431, %v423
        %v444 = vsel %vm438, %v433, %v425
        %v445 = vsel %vm438, %v435, %v427
        %v446 = vsel %vm438, %v437, %v429
        %s447 = scalar_lea.vmem [#allocation8], 2
        %v448 = vld [vmem:[%s447] ss:$8 sm:$0x3]
        %v450 = vperm.slane %v448, 0
        %v451 = vperm.slane %v448, 1
        %v454 = vmul.f32 %v443, %v450
        %v455 = vmul.f32 %v439, %v451
        %v456 = vmul.f32 %v444, %v450
        %v457 = vmul.f32 %v440, %v451
        %v458 = vmul.f32 %v445, %v450
        %v459 = vmul.f32 %v441, %v451
        %v460 = vmul.f32 %v446, %v450
        %v461 = vmul.f32 %v442, %v451
        %v462 = vpack.c.bf16 %v455, %v454
        %v463 = vpack.c.bf16 %v457, %v456
        %v464 = vpack.c.bf16 %v459, %v458
        %v465 = vpack.c.bf16 %v461, %v460
        %466 = vst [vmem:[#allocation2 + $0x80] sm:$0xff] %v462
        %467 = vst [vmem:[#allocation2 + $0x90] sm:$0xff] %v463
        %468 = vst [vmem:[#allocation2 + $0xa0] sm:$0xff] %v464
        %469 = vst [vmem:[#allocation2 + $0xb0] sm:$0xff] %v465
        %v470 = vadd.f32 %v391, %v454
        %v471 = vadd.f32 %v392, %v455
        %v472 = vadd.f32 %v393, %v456
        %v473 = vadd.f32 %v394, %v457
        %v474 = vadd.f32 %v395, %v458
        %v475 = vadd.f32 %v396, %v459
        %v476 = vadd.f32 %v397, %v460
        %v477 = vadd.f32 %v398, %v461
        %s478 = scalar_lea.vmem [#allocation8], 19
        %v479 = vld [vmem:[%s478] ss:$8 sm:$0x3]
        %v481 = vperm.slane %v479, 0
        %v482 = vperm.slane %v479, 1
        %v485 = vadd.f32 %v443, %v481
        %v486 = vadd.f32 %v439, %v482
        %v487 = vadd.f32 %v444, %v481
        %v488 = vadd.f32 %v440, %v482
        %v489 = vadd.f32 %v445, %v481
        %v490 = vadd.f32 %v441, %v482
        %v491 = vadd.f32 %v446, %v481
        %v492 = vadd.f32 %v442, %v482
        %v493 = vmax.f32 %v414, %v485
        %v494 = vmax.f32 %v415, %v486
        %v495 = vmax.f32 %v416, %v487
        %v496 = vmax.f32 %v417, %v488
        %v497 = vmax.f32 %v418, %v489
        %v498 = vmax.f32 %v419, %v490
        %v499 = vmax.f32 %v420, %v491
        %v500 = vmax.f32 %v421, %v492
        %501 = vrot.lane.b32.xlu0 %v255, 1
        %v502 = vpop.permute.xlu0 %501
        %503 = vrot.lane.b32.xlu0 %v257, 1
        %v504 = vpop.permute.xlu0 %503
        %505 = vrot.lane.b32.xlu0 %v259, 1
        %v506 = vpop.permute.xlu0 %505
        %507 = vrot.lane.b32.xlu0 %v261, 1
        %v508 = vpop.permute.xlu0 %507
        %509 = vrot.lane.b32.xlu0 %v256, 1
        %v510 = vpop.permute.xlu0 %509
        %511 = vrot.lane.b32.xlu0 %v258, 1
        %v512 = vpop.permute.xlu0 %511
        %513 = vrot.lane.b32.xlu0 %v260, 1
        %v514 = vpop.permute.xlu0 %513
        %515 = vrot.lane.b32.xlu0 %v262, 1
        %v516 = vpop.permute.xlu0 %515
        %vm517 = vcmp.lt.s32.totalorder %v280, 1
        %v518 = vsel %vm517, %v502, %v510
        %v519 = vsel %vm517, %v504, %v512
        %v520 = vsel %vm517, %v506, %v514
        %v521 = vsel %vm517, %v508, %v516
        %v522 = vsel %vm517, %v510, %v502
        %v523 = vsel %vm517, %v512, %v504
        %v524 = vsel %vm517, %v514, %v506
        %v525 = vsel %vm517, %v516, %v508
        %s526 = scalar_lea.vmem [#allocation8], 3
        %v527 = vld [vmem:[%s526] ss:$8 sm:$0x3]
        %v529 = vperm.slane %v527, 0
        %v530 = vperm.slane %v527, 1
        %v533 = vmul.f32 %v522, %v529
        %v534 = vmul.f32 %v518, %v530
        %v535 = vmul.f32 %v523, %v529
        %v536 = vmul.f32 %v519, %v530
        %v537 = vmul.f32 %v524, %v529
        %v538 = vmul.f32 %v520, %v530
        %v539 = vmul.f32 %v525, %v529
        %v540 = vmul.f32 %v521, %v530
        %v541 = vpack.c.bf16 %v534, %v533
        %v542 = vpack.c.bf16 %v536, %v535
        %v543 = vpack.c.bf16 %v538, %v537
        %v544 = vpack.c.bf16 %v540, %v539
        %545 = vst [vmem:[#allocation2 + $0xc0] sm:$0xff] %v541
        %546 = vst [vmem:[#allocation2 + $0xd0] sm:$0xff] %v542
        %547 = vst [vmem:[#allocation2 + $0xe0] sm:$0xff] %v543
        %548 = vst [vmem:[#allocation2 + $0xf0] sm:$0xff] %v544
        %v549 = vadd.f32 %v470, %v533
        %v550 = vadd.f32 %v471, %v534
        %v551 = vadd.f32 %v472, %v535
        %v552 = vadd.f32 %v473, %v536
        %v553 = vadd.f32 %v474, %v537
        %v554 = vadd.f32 %v475, %v538
        %v555 = vadd.f32 %v476, %v539
        %v556 = vadd.f32 %v477, %v540
        %s557 = scalar_lea.vmem [#allocation8], 20
        %v558 = vld [vmem:[%s557] ss:$8 sm:$0x3]
        %v560 = vperm.slane %v558, 0
        %v561 = vperm.slane %v558, 1
        %v564 = vadd.f32 %v522, %v560
        %v565 = vadd.f32 %v518, %v561
        %v566 = vadd.f32 %v523, %v560
        %v567 = vadd.f32 %v519, %v561
        %v568 = vadd.f32 %v524, %v560
        %v569 = vadd.f32 %v520, %v561
        %v570 = vadd.f32 %v525, %v560
        %v571 = vadd.f32 %v521, %v561
        %v572 = vmax.f32 %v493, %v564
        %v573 = vmax.f32 %v494, %v565
        %v574 = vmax.f32 %v495, %v566
        %v575 = vmax.f32 %v496, %v567
        %v576 = vmax.f32 %v497, %v568
        %v577 = vmax.f32 %v498, %v569
        %v578 = vmax.f32 %v499, %v570
        %v579 = vmax.f32 %v500, %v571
        %v580 = vpack.c.bf16 %v256, %v255
        %v581 = vpack.c.bf16 %v258, %v257
        %v582 = vpack.c.bf16 %v260, %v259
        %v583 = vpack.c.bf16 %v262, %v261
        %584 = vst [vmem:[#allocation2 + $0x100] sm:$0xff] %v580
        %585 = vst [vmem:[#allocation2 + $0x110] sm:$0xff] %v581
        %586 = vst [vmem:[#allocation2 + $0x120] sm:$0xff] %v582
        %587 = vst [vmem:[#allocation2 + $0x130] sm:$0xff] %v583
        %v588 = vadd.f32 %v549, %v255
        %v589 = vadd.f32 %v550, %v256
        %v590 = vadd.f32 %v551, %v257
        %v591 = vadd.f32 %v552, %v258
        %v592 = vadd.f32 %v553, %v259
        %v593 = vadd.f32 %v554, %v260
        %v594 = vadd.f32 %v555, %v261
        %v595 = vadd.f32 %v556, %v262
        %v596 = vmax.f32 %v572, %v255
        %v597 = vmax.f32 %v573, %v256
        %v598 = vmax.f32 %v574, %v257
        %v599 = vmax.f32 %v575, %v258
        %v600 = vmax.f32 %v576, %v259
        %v601 = vmax.f32 %v577, %v260
        %v602 = vmax.f32 %v578, %v261
        %v603 = vmax.f32 %v579, %v262
        %604 = vrot.lane.b32.xlu0 %v255, 127
        %v605 = vpop.permute.xlu0 %604
        %606 = vrot.lane.b32.xlu0 %v257, 127
        %v607 = vpop.permute.xlu0 %606
        %608 = vrot.lane.b32.xlu0 %v259, 127
        %v609 = vpop.permute.xlu0 %608
        %610 = vrot.lane.b32.xlu0 %v261, 127
        %v611 = vpop.permute.xlu0 %610
        %612 = vrot.lane.b32.xlu0 %v256, 127
        %v613 = vpop.permute.xlu0 %612
        %614 = vrot.lane.b32.xlu0 %v258, 127
        %v615 = vpop.permute.xlu0 %614
        %616 = vrot.lane.b32.xlu0 %v260, 127
        %v617 = vpop.permute.xlu0 %616
        %618 = vrot.lane.b32.xlu0 %v262, 127
        %v619 = vpop.permute.xlu0 %618
        %vm620 = vcmp.lt.s32.totalorder %v280, 127
        %v621 = vsel %vm620, %v605, %v613
        %v622 = vsel %vm620, %v607, %v615
        %v623 = vsel %vm620, %v609, %v617
        %v624 = vsel %vm620, %v611, %v619
        %v625 = vsel %vm620, %v613, %v605
        %v626 = vsel %vm620, %v615, %v607
        %v627 = vsel %vm620, %v617, %v609
        %v628 = vsel %vm620, %v619, %v611
        %s629 = scalar_lea.vmem [#allocation8], 5
        %v630 = vld [vmem:[%s629] ss:$8 sm:$0x3]
        %v632 = vperm.slane %v630, 0
        %v633 = vperm.slane %v630, 1
        %v636 = vmul.f32 %v621, %v632
        %v637 = vmul.f32 %v625, %v633
        %v638 = vmul.f32 %v622, %v632
        %v639 = vmul.f32 %v626, %v633
        %v640 = vmul.f32 %v623, %v632
        %v641 = vmul.f32 %v627, %v633
        %v642 = vmul.f32 %v624, %v632
        %v643 = vmul.f32 %v628, %v633
        %v644 = vpack.c.bf16 %v637, %v636
        %v645 = vpack.c.bf16 %v639, %v638
        %v646 = vpack.c.bf16 %v641, %v640
        %v647 = vpack.c.bf16 %v643, %v642
        %648 = vst [vmem:[#allocation2 + $0x140] sm:$0xff] %v644
        %649 = vst [vmem:[#allocation2 + $0x150] sm:$0xff] %v645
        %650 = vst [vmem:[#allocation2 + $0x160] sm:$0xff] %v646
        %651 = vst [vmem:[#allocation2 + $0x170] sm:$0xff] %v647
        %v652 = vadd.f32 %v588, %v636
        %v653 = vadd.f32 %v589, %v637
        %v654 = vadd.f32 %v590, %v638
        %v655 = vadd.f32 %v591, %v639
        %v656 = vadd.f32 %v592, %v640
        %v657 = vadd.f32 %v593, %v641
        %v658 = vadd.f32 %v594, %v642
        %v659 = vadd.f32 %v595, %v643
        %s660 = scalar_lea.vmem [#allocation8], 22
        %v661 = vld [vmem:[%s660] ss:$8 sm:$0x3]
        %v663 = vperm.slane %v661, 0
        %v664 = vperm.slane %v661, 1
        %v667 = vadd.f32 %v621, %v663
        %v668 = vadd.f32 %v625, %v664
        %v669 = vadd.f32 %v622, %v663
        %v670 = vadd.f32 %v626, %v664
        %v671 = vadd.f32 %v623, %v663
        %v672 = vadd.f32 %v627, %v664
        %v673 = vadd.f32 %v624, %v663
        %v674 = vadd.f32 %v628, %v664
        %v675 = vmax.f32 %v596, %v667
        %v676 = vmax.f32 %v597, %v668
        %v677 = vmax.f32 %v598, %v669
        %v678 = vmax.f32 %v599, %v670
        %v679 = vmax.f32 %v600, %v671
        %v680 = vmax.f32 %v601, %v672
        %v681 = vmax.f32 %v602, %v673
        %v682 = vmax.f32 %v603, %v674
        %683 = vrot.lane.b32.xlu0 %v255, 113
        %v684 = vpop.permute.xlu0 %683
        %685 = vrot.lane.b32.xlu0 %v257, 113
        %v686 = vpop.permute.xlu0 %685
        %687 = vrot.lane.b32.xlu0 %v259, 113
        %v688 = vpop.permute.xlu0 %687
        %689 = vrot.lane.b32.xlu0 %v261, 113
        %v690 = vpop.permute.xlu0 %689
        %691 = vrot.lane.b32.xlu0 %v256, 113
        %v692 = vpop.permute.xlu0 %691
        %693 = vrot.lane.b32.xlu0 %v258, 113
        %v694 = vpop.permute.xlu0 %693
        %695 = vrot.lane.b32.xlu0 %v260, 113
        %v696 = vpop.permute.xlu0 %695
        %697 = vrot.lane.b32.xlu0 %v262, 113
        %v698 = vpop.permute.xlu0 %697
        %vm699 = vcmp.lt.s32.totalorder %v280, 113
        %v700 = vsel %vm699, %v684, %v692
        %v701 = vsel %vm699, %v686, %v694
        %v702 = vsel %vm699, %v688, %v696
        %v703 = vsel %vm699, %v690, %v698
        %v704 = vsel %vm699, %v692, %v684
        %v705 = vsel %vm699, %v694, %v686
        %v706 = vsel %vm699, %v696, %v688
        %v707 = vsel %vm699, %v698, %v690
        %s708 = scalar_lea.vmem [#allocation8], 6
        %v709 = vld [vmem:[%s708] ss:$8 sm:$0x3]
        %v711 = vperm.slane %v709, 0
        %v712 = vperm.slane %v709, 1
        %v715 = vmul.f32 %v700, %v711
        %v716 = vmul.f32 %v704, %v712
        %v717 = vmul.f32 %v701, %v711
        %v718 = vmul.f32 %v705, %v712
        %v719 = vmul.f32 %v702, %v711
        %v720 = vmul.f32 %v706, %v712
        %v721 = vmul.f32 %v703, %v711
        %v722 = vmul.f32 %v707, %v712
        %v723 = vpack.c.bf16 %v716, %v715
        %v724 = vpack.c.bf16 %v718, %v717
        %v725 = vpack.c.bf16 %v720, %v719
        %v726 = vpack.c.bf16 %v722, %v721
        %727 = vst [vmem:[#allocation2 + $0x180] sm:$0xff] %v723
        %728 = vst [vmem:[#allocation2 + $0x190] sm:$0xff] %v724
        %729 = vst [vmem:[#allocation2 + $0x1a0] sm:$0xff] %v725
        %730 = vst [vmem:[#allocation2 + $0x1b0] sm:$0xff] %v726
        %v731 = vadd.f32 %v652, %v715
        %v732 = vadd.f32 %v653, %v716
        %v733 = vadd.f32 %v654, %v717
        %v734 = vadd.f32 %v655, %v718
        %v735 = vadd.f32 %v656, %v719
        %v736 = vadd.f32 %v657, %v720
        %v737 = vadd.f32 %v658, %v721
        %v738 = vadd.f32 %v659, %v722
        %s739 = scalar_lea.vmem [#allocation8], 23
        %v740 = vld [vmem:[%s739] ss:$8 sm:$0x3]
        %v742 = vperm.slane %v740, 0
        %v743 = vperm.slane %v740, 1
        %v746 = vadd.f32 %v700, %v742
        %v747 = vadd.f32 %v704, %v743
        %v748 = vadd.f32 %v701, %v742
        %v749 = vadd.f32 %v705, %v743
        %v750 = vadd.f32 %v702, %v742
        %v751 = vadd.f32 %v706, %v743
        %v752 = vadd.f32 %v703, %v742
        %v753 = vadd.f32 %v707, %v743
        %v754 = vmax.f32 %v675, %v746
        %v755 = vmax.f32 %v676, %v747
        %v756 = vmax.f32 %v677, %v748
        %v757 = vmax.f32 %v678, %v749
        %v758 = vmax.f32 %v679, %v750
        %v759 = vmax.f32 %v680, %v751
        %v760 = vmax.f32 %v681, %v752
        %v761 = vmax.f32 %v682, %v753
        %762 = vrot.lane.b32.xlu0 %v255, 112
        %v763 = vpop.permute.xlu0 %762
        %764 = vrot.lane.b32.xlu0 %v257, 112
        %v765 = vpop.permute.xlu0 %764
        %766 = vrot.lane.b32.xlu0 %v259, 112
        %v767 = vpop.permute.xlu0 %766
        %768 = vrot.lane.b32.xlu0 %v261, 112
        %v769 = vpop.permute.xlu0 %768
        %770 = vrot.lane.b32.xlu0 %v256, 112
        %v771 = vpop.permute.xlu0 %770
        %772 = vrot.lane.b32.xlu0 %v258, 112
        %v773 = vpop.permute.xlu0 %772
        %774 = vrot.lane.b32.xlu0 %v260, 112
        %v775 = vpop.permute.xlu0 %774
        %776 = vrot.lane.b32.xlu0 %v262, 112
        %v777 = vpop.permute.xlu0 %776
        %vm778 = vcmp.lt.s32.totalorder %v280, 112
        %v779 = vsel %vm778, %v763, %v771
        %v780 = vsel %vm778, %v765, %v773
        %v781 = vsel %vm778, %v767, %v775
        %v782 = vsel %vm778, %v769, %v777
        %v783 = vsel %vm778, %v771, %v763
        %v784 = vsel %vm778, %v773, %v765
        %v785 = vsel %vm778, %v775, %v767
        %v786 = vsel %vm778, %v777, %v769
        %s787 = scalar_lea.vmem [#allocation8], 7
        %v788 = vld [vmem:[%s787] ss:$8 sm:$0x3]
        %v790 = vperm.slane %v788, 0
        %v791 = vperm.slane %v788, 1
        %v794 = vmul.f32 %v779, %v790
        %v795 = vmul.f32 %v783, %v791
        %v796 = vmul.f32 %v780, %v790
        %v797 = vmul.f32 %v784, %v791
        %v798 = vmul.f32 %v781, %v790
        %v799 = vmul.f32 %v785, %v791
        %v800 = vmul.f32 %v782, %v790
        %v801 = vmul.f32 %v786, %v791
        %v802 = vpack.c.bf16 %v795, %v794
        %v803 = vpack.c.bf16 %v797, %v796
        %v804 = vpack.c.bf16 %v799, %v798
        %v805 = vpack.c.bf16 %v801, %v800
        %806 = vst [vmem:[#allocation2 + $0x1c0] sm:$0xff] %v802
        %807 = vst [vmem:[#allocation2 + $0x1d0] sm:$0xff] %v803
        %808 = vst [vmem:[#allocation2 + $0x1e0] sm:$0xff] %v804
        %809 = vst [vmem:[#allocation2 + $0x1f0] sm:$0xff] %v805
        %v810 = vadd.f32 %v731, %v794
        %v811 = vadd.f32 %v732, %v795
        %v812 = vadd.f32 %v733, %v796
        %v813 = vadd.f32 %v734, %v797
        %v814 = vadd.f32 %v735, %v798
        %v815 = vadd.f32 %v736, %v799
        %v816 = vadd.f32 %v737, %v800
        %v817 = vadd.f32 %v738, %v801
        %s818 = scalar_lea.vmem [#allocation8], 32
        %v819 = vld [vmem:[%s818] ss:$8 sm:$0x3]
        %v821 = vperm.slane %v819, 0
        %v822 = vperm.slane %v819, 1
        %v825 = vadd.f32 %v779, %v821
        %v826 = vadd.f32 %v783, %v822
        %v827 = vadd.f32 %v780, %v821
        %v828 = vadd.f32 %v784, %v822
        %v829 = vadd.f32 %v781, %v821
        %v830 = vadd.f32 %v785, %v822
        %v831 = vadd.f32 %v782, %v821
        %v832 = vadd.f32 %v786, %v822
        %v833 = vmax.f32 %v754, %v825
        %v834 = vmax.f32 %v755, %v826
        %v835 = vmax.f32 %v756, %v827
        %v836 = vmax.f32 %v757, %v828
        %v837 = vmax.f32 %v758, %v829
        %v838 = vmax.f32 %v759, %v830
        %v839 = vmax.f32 %v760, %v831
        %v840 = vmax.f32 %v761, %v832
        %841 = vrot.lane.b32.xlu0 %v255, 111
        %v842 = vpop.permute.xlu0 %841
        %843 = vrot.lane.b32.xlu0 %v257, 111
        %v844 = vpop.permute.xlu0 %843
        %845 = vrot.lane.b32.xlu0 %v259, 111
        %v846 = vpop.permute.xlu0 %845
        %847 = vrot.lane.b32.xlu0 %v261, 111
        %v848 = vpop.permute.xlu0 %847
        %849 = vrot.lane.b32.xlu0 %v256, 111
        %v850 = vpop.permute.xlu0 %849
        %851 = vrot.lane.b32.xlu0 %v258, 111
        %v852 = vpop.permute.xlu0 %851
        %853 = vrot.lane.b32.xlu0 %v260, 111
        %v854 = vpop.permute.xlu0 %853
        %855 = vrot.lane.b32.xlu0 %v262, 111
        %v856 = vpop.permute.xlu0 %855
        %vm857 = vcmp.lt.s32.totalorder %v280, 111
        %v858 = vsel %vm857, %v842, %v850
        %v859 = vsel %vm857, %v844, %v852
        %v860 = vsel %vm857, %v846, %v854
        %v861 = vsel %vm857, %v848, %v856
        %v862 = vsel %vm857, %v850, %v842
        %v863 = vsel %vm857, %v852, %v844
        %v864 = vsel %vm857, %v854, %v846
        %v865 = vsel %vm857, %v856, %v848
        %s866 = scalar_lea.vmem [#allocation8], 16
        %v867 = vld [vmem:[%s866] ss:$8 sm:$0x3]
        %v869 = vperm.slane %v867, 0
        %v870 = vperm.slane %v867, 1
        %v873 = vmul.f32 %v858, %v869
        %v874 = vmul.f32 %v862, %v870
        %v875 = vmul.f32 %v859, %v869
        %v876 = vmul.f32 %v863, %v870
        %v877 = vmul.f32 %v860, %v869
        %v878 = vmul.f32 %v864, %v870
        %v879 = vmul.f32 %v861, %v869
        %v880 = vmul.f32 %v865, %v870
        %v881 = vpack.c.bf16 %v874, %v873
        %v882 = vpack.c.bf16 %v876, %v875
        %v883 = vpack.c.bf16 %v878, %v877
        %v884 = vpack.c.bf16 %v880, %v879
        %885 = vst [vmem:[#allocation2 + $0x200] sm:$0xff] %v881
        %886 = vst [vmem:[#allocation2 + $0x210] sm:$0xff] %v882
        %887 = vst [vmem:[#allocation2 + $0x220] sm:$0xff] %v883
        %888 = vst [vmem:[#allocation2 + $0x230] sm:$0xff] %v884
        %v889 = vadd.f32 %v810, %v873
        %v890 = vadd.f32 %v811, %v874
        %v891 = vadd.f32 %v812, %v875
        %v892 = vadd.f32 %v813, %v876
        %v893 = vadd.f32 %v814, %v877
        %v894 = vadd.f32 %v815, %v878
        %v895 = vadd.f32 %v816, %v879
        %v896 = vadd.f32 %v817, %v880
        %s897 = scalar_lea.vmem [#allocation8], 33
        %v898 = vld [vmem:[%s897] ss:$8 sm:$0x3]
        %v900 = vperm.slane %v898, 0
        %v901 = vperm.slane %v898, 1
        %v904 = vadd.f32 %v858, %v900
        %v905 = vadd.f32 %v862, %v901
        %v906 = vadd.f32 %v859, %v900
        %v907 = vadd.f32 %v863, %v901
        %v908 = vadd.f32 %v860, %v900
        %v909 = vadd.f32 %v864, %v901
        %v910 = vadd.f32 %v861, %v900
        %v911 = vadd.f32 %v865, %v901
        %v912 = vmax.f32 %v833, %v904
        %v913 = vmax.f32 %v834, %v905
        %v914 = vmax.f32 %v835, %v906
        %v915 = vmax.f32 %v836, %v907
        %v916 = vmax.f32 %v837, %v908
        %v917 = vmax.f32 %v838, %v909
        %v918 = vmax.f32 %v839, %v910
        %v919 = vmax.f32 %v840, %v911
        %v920 = vadd.f32 %v255, %v912
        %v921 = vadd.f32 %v256, %v913
        %v922 = vadd.f32 %v257, %v914
        %v923 = vadd.f32 %v258, %v915
        %v924 = vadd.f32 %v259, %v916
        %v925 = vadd.f32 %v260, %v917
        %v926 = vadd.f32 %v261, %v918
        %v927 = vadd.f32 %v262, %v919
        %s928 = scalar_lea.vmem [#allocation8], 34
        %v929 = vld [vmem:[%s928] ss:$8 sm:$0x3]
        %v931 = vperm.slane %v929, 0
        %v932 = vperm.slane %v929, 1
        %v935 = vmul.f32 %v889, %v931
        %v936 = vmul.f32 %v890, %v932
        %v937 = vmul.f32 %v891, %v931
        %v938 = vmul.f32 %v892, %v932
        %v939 = vmul.f32 %v893, %v931
        %v940 = vmul.f32 %v894, %v932
        %v941 = vmul.f32 %v895, %v931
        %v942 = vmul.f32 %v896, %v932
        %v943 = vadd.f32 %v920, %v935
        %v944 = vadd.f32 %v921, %v936
        %v945 = vadd.f32 %v922, %v937
        %v946 = vadd.f32 %v923, %v938
        %v947 = vadd.f32 %v924, %v939
        %v948 = vadd.f32 %v925, %v940
        %v949 = vadd.f32 %v926, %v941
        %v950 = vadd.f32 %v927, %v942
        %951 = vst [vmem:[%s251] sm:$0xff] %v943
        %952 = vst [vmem:[%s251 + $0x8] sm:$0xff] %v944
        %953 = vst [vmem:[%s251 + $0x10] sm:$0xff] %v945
        %954 = vst [vmem:[%s251 + $0x18] sm:$0xff] %v946
        %955 = vst [vmem:[%s251 + $0x20] sm:$0xff] %v947
        %956 = vst [vmem:[%s251 + $0x28] sm:$0xff] %v948
        %957 = vst [vmem:[%s251 + $0x30] sm:$0xff] %v949
        %958 = vst [vmem:[%s251 + $0x38] sm:$0xff] %v950
        %s959 = scalar_lea.vmem %s216, 64 [#allocation3]
        %v960 = vld [vmem:[%s959] sm:$0xff]
        %v961 = vld [vmem:[%s959 + $0x8] sm:$0xff]
        %v962 = vld [vmem:[%s959 + $0x10] sm:$0xff]
        %v963 = vld [vmem:[%s959 + $0x18] sm:$0xff]
        %v964 = vld [vmem:[%s959 + $0x20] sm:$0xff]
        %v965 = vld [vmem:[%s959 + $0x28] sm:$0xff]
        %v966 = vld [vmem:[%s959 + $0x30] sm:$0xff]
        %v967 = vld [vmem:[%s959 + $0x38] sm:$0xff]
        %968 = vrot.lane.b32.xlu0 %v960, 17
        %v969 = vpop.permute.xlu0 %968
        %970 = vrot.lane.b32.xlu0 %v962, 17
        %v971 = vpop.permute.xlu0 %970
        %972 = vrot.lane.b32.xlu0 %v964, 17
        %v973 = vpop.permute.xlu0 %972
        %974 = vrot.lane.b32.xlu0 %v966, 17
        %v975 = vpop.permute.xlu0 %974
        %976 = vrot.lane.b32.xlu0 %v961, 17
        %v977 = vpop.permute.xlu0 %976
        %978 = vrot.lane.b32.xlu0 %v963, 17
        %v979 = vpop.permute.xlu0 %978
        %980 = vrot.lane.b32.xlu0 %v965, 17
        %v981 = vpop.permute.xlu0 %980
        %982 = vrot.lane.b32.xlu0 %v967, 17
        %v983 = vpop.permute.xlu0 %982
        %v984 = vsel %vm281, %v969, %v977
        %v985 = vsel %vm281, %v971, %v979
        %v986 = vsel %vm281, %v973, %v981
        %v987 = vsel %vm281, %v975, %v983
        %v988 = vsel %vm281, %v977, %v969
        %v989 = vsel %vm281, %v979, %v971
        %v990 = vsel %vm281, %v981, %v973
        %v991 = vsel %vm281, %v983, %v975
        %v992 = vld [vmem:[#allocation8] ss:$8 sm:$0x3]
        %v994 = vperm.slane %v992, 0
        %v995 = vperm.slane %v992, 1
        %v998 = vmul.f32 %v988, %v994
        %v999 = vmul.f32 %v984, %v995
        %v1000 = vmul.f32 %v989, %v994
        %v1001 = vmul.f32 %v985, %v995
        %v1002 = vmul.f32 %v990, %v994
        %v1003 = vmul.f32 %v986, %v995
        %v1004 = vmul.f32 %v991, %v994
        %v1005 = vmul.f32 %v987, %v995
        %v1006 = vpack.c.bf16 %v999, %v998
        %v1007 = vpack.c.bf16 %v1001, %v1000
        %v1008 = vpack.c.bf16 %v1003, %v1002
        %v1009 = vpack.c.bf16 %v1005, %v1004
        %1010 = vst [vmem:[#allocation2 + $0x8] sm:$0xff] %v1006
        %1011 = vst [vmem:[#allocation2 + $0x18] sm:$0xff] %v1007
        %1012 = vst [vmem:[#allocation2 + $0x28] sm:$0xff] %v1008
        %1013 = vst [vmem:[#allocation2 + $0x38] sm:$0xff] %v1009
        %v1014 = vadd.f32 %v998, 0.0
        %v1015 = vadd.f32 %v999, 0.0
        %v1016 = vadd.f32 %v1000, 0.0
        %v1017 = vadd.f32 %v1001, 0.0
        %v1018 = vadd.f32 %v1002, 0.0
        %v1019 = vadd.f32 %v1003, 0.0
        %v1020 = vadd.f32 %v1004, 0.0
        %v1021 = vadd.f32 %v1005, 0.0
        %v1022 = vld [vmem:[%s320] ss:$8 sm:$0x3]
        %v1024 = vperm.slane %v1022, 0
        %v1025 = vperm.slane %v1022, 1
        %v1028 = vadd.f32 %v988, %v1024
        %v1029 = vadd.f32 %v984, %v1025
        %v1030 = vadd.f32 %v989, %v1024
        %v1031 = vadd.f32 %v985, %v1025
        %v1032 = vadd.f32 %v990, %v1024
        %v1033 = vadd.f32 %v986, %v1025
        %v1034 = vadd.f32 %v991, %v1024
        %v1035 = vadd.f32 %v987, %v1025
        %v1036 = vmax.f32 %v1028, -3.4028235e+38
        %v1037 = vmax.f32 %v1029, -3.4028235e+38
        %v1038 = vmax.f32 %v1030, -3.4028235e+38
        %v1039 = vmax.f32 %v1031, -3.4028235e+38
        %v1040 = vmax.f32 %v1032, -3.4028235e+38
        %v1041 = vmax.f32 %v1033, -3.4028235e+38
        %v1042 = vmax.f32 %v1034, -3.4028235e+38
        %v1043 = vmax.f32 %v1035, -3.4028235e+38
        %1044 = vrot.lane.b32.xlu0 %v960, 16
        %v1045 = vpop.permute.xlu0 %1044
        %1046 = vrot.lane.b32.xlu0 %v962, 16
        %v1047 = vpop.permute.xlu0 %1046
        %1048 = vrot.lane.b32.xlu0 %v964, 16
        %v1049 = vpop.permute.xlu0 %1048
        %1050 = vrot.lane.b32.xlu0 %v966, 16
        %v1051 = vpop.permute.xlu0 %1050
        %1052 = vrot.lane.b32.xlu0 %v961, 16
        %v1053 = vpop.permute.xlu0 %1052
        %1054 = vrot.lane.b32.xlu0 %v963, 16
        %v1055 = vpop.permute.xlu0 %1054
        %1056 = vrot.lane.b32.xlu0 %v965, 16
        %v1057 = vpop.permute.xlu0 %1056
        %1058 = vrot.lane.b32.xlu0 %v967, 16
        %v1059 = vpop.permute.xlu0 %1058
        %v1060 = vsel %vm359, %v1045, %v1053
        %v1061 = vsel %vm359, %v1047, %v1055
        %v1062 = vsel %vm359, %v1049, %v1057
        %v1063 = vsel %vm359, %v1051, %v1059
        %v1064 = vsel %vm359, %v1053, %v1045
        %v1065 = vsel %vm359, %v1055, %v1047
        %v1066 = vsel %vm359, %v1057, %v1049
        %v1067 = vsel %vm359, %v1059, %v1051
        %v1068 = vld [vmem:[%s368] ss:$8 sm:$0x3]
        %v1070 = vperm.slane %v1068, 0
        %v1071 = vperm.slane %v1068, 1
        %v1074 = vmul.f32 %v1064, %v1070
        %v1075 = vmul.f32 %v1060, %v1071
        %v1076 = vmul.f32 %v1065, %v1070
        %v1077 = vmul.f32 %v1061, %v1071
        %v1078 = vmul.f32 %v1066, %v1070
        %v1079 = vmul.f32 %v1062, %v1071
        %v1080 = vmul.f32 %v1067, %v1070
        %v1081 = vmul.f32 %v1063, %v1071
        %v1082 = vpack.c.bf16 %v1075, %v1074
        %v1083 = vpack.c.bf16 %v1077, %v1076
        %v1084 = vpack.c.bf16 %v1079, %v1078
        %v1085 = vpack.c.bf16 %v1081, %v1080
        %1086 = vst [vmem:[#allocation2 + $0x48] sm:$0xff] %v1082
        %1087 = vst [vmem:[#allocation2 + $0x58] sm:$0xff] %v1083
        %1088 = vst [vmem:[#allocation2 + $0x68] sm:$0xff] %v1084
        %1089 = vst [vmem:[#allocation2 + $0x78] sm:$0xff] %v1085
        %v1090 = vadd.f32 %v1014, %v1074
        %v1091 = vadd.f32 %v1015, %v1075
        %v1092 = vadd.f32 %v1016, %v1076
        %v1093 = vadd.f32 %v1017, %v1077
        %v1094 = vadd.f32 %v1018, %v1078
        %v1095 = vadd.f32 %v1019, %v1079
        %v1096 = vadd.f32 %v1020, %v1080
        %v1097 = vadd.f32 %v1021, %v1081
        %v1098 = vld [vmem:[%s399] ss:$8 sm:$0x3]
        %v1100 = vperm.slane %v1098, 0
        %v1101 = vperm.slane %v1098, 1
        %v1104 = vadd.f32 %v1064, %v1100
        %v1105 = vadd.f32 %v1060, %v1101
        %v1106 = vadd.f32 %v1065, %v1100
        %v1107 = vadd.f32 %v1061, %v1101
        %v1108 = vadd.f32 %v1066, %v1100
        %v1109 = vadd.f32 %v1062, %v1101
        %v1110 = vadd.f32 %v1067, %v1100
        %v1111 = vadd.f32 %v1063, %v1101
        %v1112 = vmax.f32 %v1036, %v1104
        %v1113 = vmax.f32 %v1037, %v1105
        %v1114 = vmax.f32 %v1038, %v1106
        %v1115 = vmax.f32 %v1039, %v1107
        %v1116 = vmax.f32 %v1040, %v1108
        %v1117 = vmax.f32 %v1041, %v1109
        %v1118 = vmax.f32 %v1042, %v1110
        %v1119 = vmax.f32 %v1043, %v1111
        %1120 = vrot.lane.b32.xlu0 %v960, 15
        %v1121 = vpop.permute.xlu0 %1120
        %1122 = vrot.lane.b32.xlu0 %v962, 15
        %v1123 = vpop.permute.xlu0 %1122
        %1124 = vrot.lane.b32.xlu0 %v964, 15
        %v1125 = vpop.permute.xlu0 %1124
        %1126 = vrot.lane.b32.xlu0 %v966, 15
        %v1127 = vpop.permute.xlu0 %1126
        %1128 = vrot.lane.b32.xlu0 %v961, 15
        %v1129 = vpop.permute.xlu0 %1128
        %1130 = vrot.lane.b32.xlu0 %v963, 15
        %v1131 = vpop.permute.xlu0 %1130
        %1132 = vrot.lane.b32.xlu0 %v965, 15
        %v1133 = vpop.permute.xlu0 %1132
        %1134 = vrot.lane.b32.xlu0 %v967, 15
        %v1135 = vpop.permute.xlu0 %1134
        %v1136 = vsel %vm438, %v1121, %v1129
        %v1137 = vsel %vm438, %v1123, %v1131
        %v1138 = vsel %vm438, %v1125, %v1133
        %v1139 = vsel %vm438, %v1127, %v1135
        %v1140 = vsel %vm438, %v1129, %v1121
        %v1141 = vsel %vm438, %v1131, %v1123
        %v1142 = vsel %vm438, %v1133, %v1125
        %v1143 = vsel %vm438, %v1135, %v1127
        %v1144 = vld [vmem:[%s447] ss:$8 sm:$0x3]
        %v1146 = vperm.slane %v1144, 0
        %v1147 = vperm.slane %v1144, 1
        %v1150 = vmul.f32 %v1140, %v1146
        %v1151 = vmul.f32 %v1136, %v1147
        %v1152 = vmul.f32 %v1141, %v1146
        %v1153 = vmul.f32 %v1137, %v1147
        %v1154 = vmul.f32 %v1142, %v1146
        %v1155 = vmul.f32 %v1138, %v1147
        %v1156 = vmul.f32 %v1143, %v1146
        %v1157 = vmul.f32 %v1139, %v1147
        %v1158 = vpack.c.bf16 %v1151, %v1150
        %v1159 = vpack.c.bf16 %v1153, %v1152
        %v1160 = vpack.c.bf16 %v1155, %v1154
        %v1161 = vpack.c.bf16 %v1157, %v1156
        %1162 = vst [vmem:[#allocation2 + $0x88] sm:$0xff] %v1158
        %1163 = vst [vmem:[#allocation2 + $0x98] sm:$0xff] %v1159
        %1164 = vst [vmem:[#allocation2 + $0xa8] sm:$0xff] %v1160
        %1165 = vst [vmem:[#allocation2 + $0xb8] sm:$0xff] %v1161
        %v1166 = vadd.f32 %v1090, %v1150
        %v1167 = vadd.f32 %v1091, %v1151
        %v1168 = vadd.f32 %v1092, %v1152
        %v1169 = vadd.f32 %v1093, %v1153
        %v1170 = vadd.f32 %v1094, %v1154
        %v1171 = vadd.f32 %v1095, %v1155
        %v1172 = vadd.f32 %v1096, %v1156
        %v1173 = vadd.f32 %v1097, %v1157
        %v1174 = vld [vmem:[%s478] ss:$8 sm:$0x3]
        %v1176 = vperm.slane %v1174, 0
        %v1177 = vperm.slane %v1174, 1
        %v1180 = vadd.f32 %v1140, %v1176
        %v1181 = vadd.f32 %v1136, %v1177
        %v1182 = vadd.f32 %v1141, %v1176
        %v1183 = vadd.f32 %v1137, %v1177
        %v1184 = vadd.f32 %v1142, %v1176
        %v1185 = vadd.f32 %v1138, %v1177
        %v1186 = vadd.f32 %v1143, %v1176
        %v1187 = vadd.f32 %v1139, %v1177
        %v1188 = vmax.f32 %v1112, %v1180
        %v1189 = vmax.f32 %v1113, %v1181
        %v1190 = vmax.f32 %v1114, %v1182
        %v1191 = vmax.f32 %v1115, %v1183
        %v1192 = vmax.f32 %v1116, %v1184
        %v1193 = vmax.f32 %v1117, %v1185
        %v1194 = vmax.f32 %v1118, %v1186
        %v1195 = vmax.f32 %v1119, %v1187
        %1196 = vrot.lane.b32.xlu0 %v960, 1
        %v1197 = vpop.permute.xlu0 %1196
        %1198 = vrot.lane.b32.xlu0 %v962, 1
        %v1199 = vpop.permute.xlu0 %1198
        %1200 = vrot.lane.b32.xlu0 %v964, 1
        %v1201 = vpop.permute.xlu0 %1200
        %1202 = vrot.lane.b32.xlu0 %v966, 1
        %v1203 = vpop.permute.xlu0 %1202
        %1204 = vrot.lane.b32.xlu0 %v961, 1
        %v1205 = vpop.permute.xlu0 %1204
        %1206 = vrot.lane.b32.xlu0 %v963, 1
        %v1207 = vpop.permute.xlu0 %1206
        %1208 = vrot.lane.b32.xlu0 %v965, 1
        %v1209 = vpop.permute.xlu0 %1208
        %1210 = vrot.lane.b32.xlu0 %v967, 1
        %v1211 = vpop.permute.xlu0 %1210
        %v1212 = vsel %vm517, %v1197, %v1205
        %v1213 = vsel %vm517, %v1199, %v1207
        %v1214 = vsel %vm517, %v1201, %v1209
        %v1215 = vsel %vm517, %v1203, %v1211
        %v1216 = vsel %vm517, %v1205, %v1197
        %v1217 = vsel %vm517, %v1207, %v1199
        %v1218 = vsel %vm517, %v1209, %v1201
        %v1219 = vsel %vm517, %v1211, %v1203
        %v1220 = vld [vmem:[%s526] ss:$8 sm:$0x3]
        %v1222 = vperm.slane %v1220, 0
        %v1223 = vperm.slane %v1220, 1
        %v1226 = vmul.f32 %v1216, %v1222
        %v1227 = vmul.f32 %v1212, %v1223
        %v1228 = vmul.f32 %v1217, %v1222
        %v1229 = vmul.f32 %v1213, %v1223
        %v1230 = vmul.f32 %v1218, %v1222
        %v1231 = vmul.f32 %v1214, %v1223
        %v1232 = vmul.f32 %v1219, %v1222
        %v1233 = vmul.f32 %v1215, %v1223
        %v1234 = vpack.c.bf16 %v1227, %v1226
        %v1235 = vpack.c.bf16 %v1229, %v1228
        %v1236 = vpack.c.bf16 %v1231, %v1230
        %v1237 = vpack.c.bf16 %v1233, %v1232
        %1238 = vst [vmem:[#allocation2 + $0xc8] sm:$0xff] %v1234
        %1239 = vst [vmem:[#allocation2 + $0xd8] sm:$0xff] %v1235
        %1240 = vst [vmem:[#allocation2 + $0xe8] sm:$0xff] %v1236
        %1241 = vst [vmem:[#allocation2 + $0xf8] sm:$0xff] %v1237
        %v1242 = vadd.f32 %v1166, %v1226
        %v1243 = vadd.f32 %v1167, %v1227
        %v1244 = vadd.f32 %v1168, %v1228
        %v1245 = vadd.f32 %v1169, %v1229
        %v1246 = vadd.f32 %v1170, %v1230
        %v1247 = vadd.f32 %v1171, %v1231
        %v1248 = vadd.f32 %v1172, %v1232
        %v1249 = vadd.f32 %v1173, %v1233
        %v1250 = vld [vmem:[%s557] ss:$8 sm:$0x3]
        %v1252 = vperm.slane %v1250, 0
        %v1253 = vperm.slane %v1250, 1
        %v1256 = vadd.f32 %v1216, %v1252
        %v1257 = vadd.f32 %v1212, %v1253
        %v1258 = vadd.f32 %v1217, %v1252
        %v1259 = vadd.f32 %v1213, %v1253
        %v1260 = vadd.f32 %v1218, %v1252
        %v1261 = vadd.f32 %v1214, %v1253
        %v1262 = vadd.f32 %v1219, %v1252
        %v1263 = vadd.f32 %v1215, %v1253
        %v1264 = vmax.f32 %v1188, %v1256
        %v1265 = vmax.f32 %v1189, %v1257
        %v1266 = vmax.f32 %v1190, %v1258
        %v1267 = vmax.f32 %v1191, %v1259
        %v1268 = vmax.f32 %v1192, %v1260
        %v1269 = vmax.f32 %v1193, %v1261
        %v1270 = vmax.f32 %v1194, %v1262
        %v1271 = vmax.f32 %v1195, %v1263
        %v1272 = vpack.c.bf16 %v961, %v960
        %v1273 = vpack.c.bf16 %v963, %v962
        %v1274 = vpack.c.bf16 %v965, %v964
        %v1275 = vpack.c.bf16 %v967, %v966
        %1276 = vst [vmem:[#allocation2 + $0x108] sm:$0xff] %v1272
        %1277 = vst [vmem:[#allocation2 + $0x118] sm:$0xff] %v1273
        %1278 = vst [vmem:[#allocation2 + $0x128] sm:$0xff] %v1274
        %1279 = vst [vmem:[#allocation2 + $0x138] sm:$0xff] %v1275
        %v1280 = vadd.f32 %v1242, %v960
        %v1281 = vadd.f32 %v1243, %v961
        %v1282 = vadd.f32 %v1244, %v962
        %v1283 = vadd.f32 %v1245, %v963
        %v1284 = vadd.f32 %v1246, %v964
        %v1285 = vadd.f32 %v1247, %v965
        %v1286 = vadd.f32 %v1248, %v966
        %v1287 = vadd.f32 %v1249, %v967
        %v1288 = vmax.f32 %v1264, %v960
        %v1289 = vmax.f32 %v1265, %v961
        %v1290 = vmax.f32 %v1266, %v962
        %v1291 = vmax.f32 %v1267, %v963
        %v1292 = vmax.f32 %v1268, %v964
        %v1293 = vmax.f32 %v1269, %v965
        %v1294 = vmax.f32 %v1270, %v966
        %v1295 = vmax.f32 %v1271, %v967
        %1296 = vrot.lane.b32.xlu0 %v960, 127
        %v1297 = vpop.permute.xlu0 %1296
        %1298 = vrot.lane.b32.xlu0 %v962, 127
        %v1299 = vpop.permute.xlu0 %1298
        %1300 = vrot.lane.b32.xlu0 %v964, 127
        %v1301 = vpop.permute.xlu0 %1300
        %1302 = vrot.lane.b32.xlu0 %v966, 127
        %v1303 = vpop.permute.xlu0 %1302
        %1304 = vrot.lane.b32.xlu0 %v961, 127
        %v1305 = vpop.permute.xlu0 %1304
        %1306 = vrot.lane.b32.xlu0 %v963, 127
        %v1307 = vpop.permute.xlu0 %1306
        %1308 = vrot.lane.b32.xlu0 %v965, 127
        %v1309 = vpop.permute.xlu0 %1308
        %1310 = vrot.lane.b32.xlu0 %v967, 127
        %v1311 = vpop.permute.xlu0 %1310
        %v1312 = vsel %vm620, %v1297, %v1305
        %v1313 = vsel %vm620, %v1299, %v1307
        %v1314 = vsel %vm620, %v1301, %v1309
        %v1315 = vsel %vm620, %v1303, %v1311
        %v1316 = vsel %vm620, %v1305, %v1297
        %v1317 = vsel %vm620, %v1307, %v1299
        %v1318 = vsel %vm620, %v1309, %v1301
        %v1319 = vsel %vm620, %v1311, %v1303
        %v1320 = vld [vmem:[%s629] ss:$8 sm:$0x3]
        %v1322 = vperm.slane %v1320, 0
        %v1323 = vperm.slane %v1320, 1
        %v1326 = vmul.f32 %v1312, %v1322
        %v1327 = vmul.f32 %v1316, %v1323
        %v1328 = vmul.f32 %v1313, %v1322
        %v1329 = vmul.f32 %v1317, %v1323
        %v1330 = vmul.f32 %v1314, %v1322
        %v1331 = vmul.f32 %v1318, %v1323
        %v1332 = vmul.f32 %v1315, %v1322
        %v1333 = vmul.f32 %v1319, %v1323
        %v1334 = vpack.c.bf16 %v1327, %v1326
        %v1335 = vpack.c.bf16 %v1329, %v1328
        %v1336 = vpack.c.bf16 %v1331, %v1330
        %v1337 = vpack.c.bf16 %v1333, %v1332
        %1338 = vst [vmem:[#allocation2 + $0x148] sm:$0xff] %v1334
        %1339 = vst [vmem:[#allocation2 + $0x158] sm:$0xff] %v1335
        %1340 = vst [vmem:[#allocation2 + $0x168] sm:$0xff] %v1336
        %1341 = vst [vmem:[#allocation2 + $0x178] sm:$0xff] %v1337
        %v1342 = vadd.f32 %v1280, %v1326
        %v1343 = vadd.f32 %v1281, %v1327
        %v1344 = vadd.f32 %v1282, %v1328
        %v1345 = vadd.f32 %v1283, %v1329
        %v1346 = vadd.f32 %v1284, %v1330
        %v1347 = vadd.f32 %v1285, %v1331
        %v1348 = vadd.f32 %v1286, %v1332
        %v1349 = vadd.f32 %v1287, %v1333
        %v1350 = vld [vmem:[%s660] ss:$8 sm:$0x3]
        %v1352 = vperm.slane %v1350, 0
        %v1353 = vperm.slane %v1350, 1
        %v1356 = vadd.f32 %v1312, %v1352
        %v1357 = vadd.f32 %v1316, %v1353
        %v1358 = vadd.f32 %v1313, %v1352
        %v1359 = vadd.f32 %v1317, %v1353
        %v1360 = vadd.f32 %v1314, %v1352
        %v1361 = vadd.f32 %v1318, %v1353
        %v1362 = vadd.f32 %v1315, %v1352
        %v1363 = vadd.f32 %v1319, %v1353
        %v1364 = vmax.f32 %v1288, %v1356
        %v1365 = vmax.f32 %v1289, %v1357
        %v1366 = vmax.f32 %v1290, %v1358
        %v1367 = vmax.f32 %v1291, %v1359
        %v1368 = vmax.f32 %v1292, %v1360
        %v1369 = vmax.f32 %v1293, %v1361
        %v1370 = vmax.f32 %v1294, %v1362
        %v1371 = vmax.f32 %v1295, %v1363
        %1372 = vrot.lane.b32.xlu0 %v960, 113
        %v1373 = vpop.permute.xlu0 %1372
        %1374 = vrot.lane.b32.xlu0 %v962, 113
        %v1375 = vpop.permute.xlu0 %1374
        %1376 = vrot.lane.b32.xlu0 %v964, 113
        %v1377 = vpop.permute.xlu0 %1376
        %1378 = vrot.lane.b32.xlu0 %v966, 113
        %v1379 = vpop.permute.xlu0 %1378
        %1380 = vrot.lane.b32.xlu0 %v961, 113
        %v1381 = vpop.permute.xlu0 %1380
        %1382 = vrot.lane.b32.xlu0 %v963, 113
        %v1383 = vpop.permute.xlu0 %1382
        %1384 = vrot.lane.b32.xlu0 %v965, 113
        %v1385 = vpop.permute.xlu0 %1384
        %1386 = vrot.lane.b32.xlu0 %v967, 113
        %v1387 = vpop.permute.xlu0 %1386
        %v1388 = vsel %vm699, %v1373, %v1381
        %v1389 = vsel %vm699, %v1375, %v1383
        %v1390 = vsel %vm699, %v1377, %v1385
        %v1391 = vsel %vm699, %v1379, %v1387
        %v1392 = vsel %vm699, %v1381, %v1373
        %v1393 = vsel %vm699, %v1383, %v1375
        %v1394 = vsel %vm699, %v1385, %v1377
        %v1395 = vsel %vm699, %v1387, %v1379
        %v1396 = vld [vmem:[%s708] ss:$8 sm:$0x3]
        %v1398 = vperm.slane %v1396, 0
        %v1399 = vperm.slane %v1396, 1
        %v1402 = vmul.f32 %v1388, %v1398
        %v1403 = vmul.f32 %v1392, %v1399
        %v1404 = vmul.f32 %v1389, %v1398
        %v1405 = vmul.f32 %v1393, %v1399
        %v1406 = vmul.f32 %v1390, %v1398
        %v1407 = vmul.f32 %v1394, %v1399
        %v1408 = vmul.f32 %v1391, %v1398
        %v1409 = vmul.f32 %v1395, %v1399
        %v1410 = vpack.c.bf16 %v1403, %v1402
        %v1411 = vpack.c.bf16 %v1405, %v1404
        %v1412 = vpack.c.bf16 %v1407, %v1406
        %v1413 = vpack.c.bf16 %v1409, %v1408
        %1414 = vst [vmem:[#allocation2 + $0x188] sm:$0xff] %v1410
        %1415 = vst [vmem:[#allocation2 + $0x198] sm:$0xff] %v1411
        %1416 = vst [vmem:[#allocation2 + $0x1a8] sm:$0xff] %v1412
        %1417 = vst [vmem:[#allocation2 + $0x1b8] sm:$0xff] %v1413
        %v1418 = vadd.f32 %v1342, %v1402
        %v1419 = vadd.f32 %v1343, %v1403
        %v1420 = vadd.f32 %v1344, %v1404
        %v1421 = vadd.f32 %v1345, %v1405
        %v1422 = vadd.f32 %v1346, %v1406
        %v1423 = vadd.f32 %v1347, %v1407
        %v1424 = vadd.f32 %v1348, %v1408
        %v1425 = vadd.f32 %v1349, %v1409
        %v1426 = vld [vmem:[%s739] ss:$8 sm:$0x3]
        %v1428 = vperm.slane %v1426, 0
        %v1429 = vperm.slane %v1426, 1
        %v1432 = vadd.f32 %v1388, %v1428
        %v1433 = vadd.f32 %v1392, %v1429
        %v1434 = vadd.f32 %v1389, %v1428
        %v1435 = vadd.f32 %v1393, %v1429
        %v1436 = vadd.f32 %v1390, %v1428
        %v1437 = vadd.f32 %v1394, %v1429
        %v1438 = vadd.f32 %v1391, %v1428
        %v1439 = vadd.f32 %v1395, %v1429
        %v1440 = vmax.f32 %v1364, %v1432
        %v1441 = vmax.f32 %v1365, %v1433
        %v1442 = vmax.f32 %v1366, %v1434
        %v1443 = vmax.f32 %v1367, %v1435
        %v1444 = vmax.f32 %v1368, %v1436
        %v1445 = vmax.f32 %v1369, %v1437
        %v1446 = vmax.f32 %v1370, %v1438
        %v1447 = vmax.f32 %v1371, %v1439
        %1448 = vrot.lane.b32.xlu0 %v960, 112
        %v1449 = vpop.permute.xlu0 %1448
        %1450 = vrot.lane.b32.xlu0 %v962, 112
        %v1451 = vpop.permute.xlu0 %1450
        %1452 = vrot.lane.b32.xlu0 %v964, 112
        %v1453 = vpop.permute.xlu0 %1452
        %1454 = vrot.lane.b32.xlu0 %v966, 112
        %v1455 = vpop.permute.xlu0 %1454
        %1456 = vrot.lane.b32.xlu0 %v961, 112
        %v1457 = vpop.permute.xlu0 %1456
        %1458 = vrot.lane.b32.xlu0 %v963, 112
        %v1459 = vpop.permute.xlu0 %1458
        %1460 = vrot.lane.b32.xlu0 %v965, 112
        %v1461 = vpop.permute.xlu0 %1460
        %1462 = vrot.lane.b32.xlu0 %v967, 112
        %v1463 = vpop.permute.xlu0 %1462
        %v1464 = vsel %vm778, %v1449, %v1457
        %v1465 = vsel %vm778, %v1451, %v1459
        %v1466 = vsel %vm778, %v1453, %v1461
        %v1467 = vsel %vm778, %v1455, %v1463
        %v1468 = vsel %vm778, %v1457, %v1449
        %v1469 = vsel %vm778, %v1459, %v1451
        %v1470 = vsel %vm778, %v1461, %v1453
        %v1471 = vsel %vm778, %v1463, %v1455
        %v1472 = vld [vmem:[%s787] ss:$8 sm:$0x3]
        %v1474 = vperm.slane %v1472, 0
        %v1475 = vperm.slane %v1472, 1
        %v1478 = vmul.f32 %v1464, %v1474
        %v1479 = vmul.f32 %v1468, %v1475
        %v1480 = vmul.f32 %v1465, %v1474
        %v1481 = vmul.f32 %v1469, %v1475
        %v1482 = vmul.f32 %v1466, %v1474
        %v1483 = vmul.f32 %v1470, %v1475
        %v1484 = vmul.f32 %v1467, %v1474
        %v1485 = vmul.f32 %v1471, %v1475
        %v1486 = vpack.c.bf16 %v1479, %v1478
        %v1487 = vpack.c.bf16 %v1481, %v1480
        %v1488 = vpack.c.bf16 %v1483, %v1482
        %v1489 = vpack.c.bf16 %v1485, %v1484
        %1490 = vst [vmem:[#allocation2 + $0x1c8] sm:$0xff] %v1486
        %1491 = vst [vmem:[#allocation2 + $0x1d8] sm:$0xff] %v1487
        %1492 = vst [vmem:[#allocation2 + $0x1e8] sm:$0xff] %v1488
        %1493 = vst [vmem:[#allocation2 + $0x1f8] sm:$0xff] %v1489
        %v1494 = vadd.f32 %v1418, %v1478
        %v1495 = vadd.f32 %v1419, %v1479
        %v1496 = vadd.f32 %v1420, %v1480
        %v1497 = vadd.f32 %v1421, %v1481
        %v1498 = vadd.f32 %v1422, %v1482
        %v1499 = vadd.f32 %v1423, %v1483
        %v1500 = vadd.f32 %v1424, %v1484
        %v1501 = vadd.f32 %v1425, %v1485
        %v1502 = vld [vmem:[%s818] ss:$8 sm:$0x3]
        %v1504 = vperm.slane %v1502, 0
        %v1505 = vperm.slane %v1502, 1
        %v1508 = vadd.f32 %v1464, %v1504
        %v1509 = vadd.f32 %v1468, %v1505
        %v1510 = vadd.f32 %v1465, %v1504
        %v1511 = vadd.f32 %v1469, %v1505
        %v1512 = vadd.f32 %v1466, %v1504
        %v1513 = vadd.f32 %v1470, %v1505
        %v1514 = vadd.f32 %v1467, %v1504
        %v1515 = vadd.f32 %v1471, %v1505
        %v1516 = vmax.f32 %v1440, %v1508
        %v1517 = vmax.f32 %v1441, %v1509
        %v1518 = vmax.f32 %v1442, %v1510
        %v1519 = vmax.f32 %v1443, %v1511
        %v1520 = vmax.f32 %v1444, %v1512
        %v1521 = vmax.f32 %v1445, %v1513
        %v1522 = vmax.f32 %v1446, %v1514
        %v1523 = vmax.f32 %v1447, %v1515
        %1524 = vrot.lane.b32.xlu0 %v960, 111
        %v1525 = vpop.permute.xlu0 %1524
        %1526 = vrot.lane.b32.xlu0 %v962, 111
        %v1527 = vpop.permute.xlu0 %1526
        %1528 = vrot.lane.b32.xlu0 %v964, 111
        %v1529 = vpop.permute.xlu0 %1528
        %1530 = vrot.lane.b32.xlu0 %v966, 111
        %v1531 = vpop.permute.xlu0 %1530
        %1532 = vrot.lane.b32.xlu0 %v961, 111
        %v1533 = vpop.permute.xlu0 %1532
        %1534 = vrot.lane.b32.xlu0 %v963, 111
        %v1535 = vpop.permute.xlu0 %1534
        %1536 = vrot.lane.b32.xlu0 %v965, 111
        %v1537 = vpop.permute.xlu0 %1536
        %1538 = vrot.lane.b32.xlu0 %v967, 111
        %v1539 = vpop.permute.xlu0 %1538
        %v1540 = vsel %vm857, %v1525, %v1533
        %v1541 = vsel %vm857, %v1527, %v1535
        %v1542 = vsel %vm857, %v1529, %v1537
        %v1543 = vsel %vm857, %v1531, %v1539
        %v1544 = vsel %vm857, %v1533, %v1525
        %v1545 = vsel %vm857, %v1535, %v1527
        %v1546 = vsel %vm857, %v1537, %v1529
        %v1547 = vsel %vm857, %v1539, %v1531
        %v1548 = vld [vmem:[%s866] ss:$8 sm:$0x3]
        %v1550 = vperm.slane %v1548, 0
        %v1551 = vperm.slane %v1548, 1
        %v1554 = vmul.f32 %v1540, %v1550
        %v1555 = vmul.f32 %v1544, %v1551
        %v1556 = vmul.f32 %v1541, %v1550
        %v1557 = vmul.f32 %v1545, %v1551
        %v1558 = vmul.f32 %v1542, %v1550
        %v1559 = vmul.f32 %v1546, %v1551
        %v1560 = vmul.f32 %v1543, %v1550
        %v1561 = vmul.f32 %v1547, %v1551
        %v1562 = vpack.c.bf16 %v1555, %v1554
        %v1563 = vpack.c.bf16 %v1557, %v1556
        %v1564 = vpack.c.bf16 %v1559, %v1558
        %v1565 = vpack.c.bf16 %v1561, %v1560
        %1566 = vst [vmem:[#allocation2 + $0x208] sm:$0xff] %v1562
        %1567 = vst [vmem:[#allocation2 + $0x218] sm:$0xff] %v1563
        %1568 = vst [vmem:[#allocation2 + $0x228] sm:$0xff] %v1564
        %1569 = vst [vmem:[#allocation2 + $0x238] sm:$0xff] %v1565
        %v1570 = vadd.f32 %v1494, %v1554
        %v1571 = vadd.f32 %v1495, %v1555
        %v1572 = vadd.f32 %v1496, %v1556
        %v1573 = vadd.f32 %v1497, %v1557
        %v1574 = vadd.f32 %v1498, %v1558
        %v1575 = vadd.f32 %v1499, %v1559
        %v1576 = vadd.f32 %v1500, %v1560
        %v1577 = vadd.f32 %v1501, %v1561
        %v1578 = vld [vmem:[%s897] ss:$8 sm:$0x3]
        %v1580 = vperm.slane %v1578, 0
        %v1581 = vperm.slane %v1578, 1
        %v1584 = vadd.f32 %v1540, %v1580
        %v1585 = vadd.f32 %v1544, %v1581
        %v1586 = vadd.f32 %v1541, %v1580
        %v1587 = vadd.f32 %v1545, %v1581
        %v1588 = vadd.f32 %v1542, %v1580
        %v1589 = vadd.f32 %v1546, %v1581
        %v1590 = vadd.f32 %v1543, %v1580
        %v1591 = vadd.f32 %v1547, %v1581
        %v1592 = vmax.f32 %v1516, %v1584
        %v1593 = vmax.f32 %v1517, %v1585
        %v1594 = vmax.f32 %v1518, %v1586
        %v1595 = vmax.f32 %v1519, %v1587
        %v1596 = vmax.f32 %v1520, %v1588
        %v1597 = vmax.f32 %v1521, %v1589
        %v1598 = vmax.f32 %v1522, %v1590
        %v1599 = vmax.f32 %v1523, %v1591
        %v1600 = vadd.f32 %v960, %v1592
        %v1601 = vadd.f32 %v961, %v1593
        %v1602 = vadd.f32 %v962, %v1594
        %v1603 = vadd.f32 %v963, %v1595
        %v1604 = vadd.f32 %v964, %v1596
        %v1605 = vadd.f32 %v965, %v1597
        %v1606 = vadd.f32 %v966, %v1598
        %v1607 = vadd.f32 %v967, %v1599
        %v1608 = vld [vmem:[%s928] ss:$8 sm:$0x3]
        %v1610 = vperm.slane %v1608, 0
        %v1611 = vperm.slane %v1608, 1
        %v1614 = vmul.f32 %v1570, %v1610
        %v1615 = vmul.f32 %v1571, %v1611
        %v1616 = vmul.f32 %v1572, %v1610
        %v1617 = vmul.f32 %v1573, %v1611
        %v1618 = vmul.f32 %v1574, %v1610
        %v1619 = vmul.f32 %v1575, %v1611
        %v1620 = vmul.f32 %v1576, %v1610
        %v1621 = vmul.f32 %v1577, %v1611
        %v1622 = vadd.f32 %v1600, %v1614
        %v1623 = vadd.f32 %v1601, %v1615
        %v1624 = vadd.f32 %v1602, %v1616
        %v1625 = vadd.f32 %v1603, %v1617
        %v1626 = vadd.f32 %v1604, %v1618
        %v1627 = vadd.f32 %v1605, %v1619
        %v1628 = vadd.f32 %v1606, %v1620
        %v1629 = vadd.f32 %v1607, %v1621
        %s1630 = scalar_lea.vmem %s251, 64 [#allocation9]
        %1631 = vst [vmem:[%s1630] sm:$0xff] %v1622
        %1632 = vst [vmem:[%s1630 + $0x8] sm:$0xff] %v1623
        %1633 = vst [vmem:[%s1630 + $0x10] sm:$0xff] %v1624
        %1634 = vst [vmem:[%s1630 + $0x18] sm:$0xff] %v1625
        %1635 = vst [vmem:[%s1630 + $0x20] sm:$0xff] %v1626
        %1636 = vst [vmem:[%s1630 + $0x28] sm:$0xff] %v1627
        %1637 = vst [vmem:[%s1630 + $0x30] sm:$0xff] %v1628
        %1638 = vst [vmem:[%s1630 + $0x38] sm:$0xff] %v1629
        %v1639 = vld [vmem:[#allocation6] sm:$0xff]
        %v1640 = vld [vmem:[#allocation6 + $0x8] sm:$0xf]
        %v1641 = vld [vmem:[#allocation6 + $0xc] sm:$0xff]
        %v1642 = vld [vmem:[#allocation6 + $0x14] sm:$0xf]
        %v1643 = vld [vmem:[#allocation6 + $0x18] sm:$0xff]
        %v1644 = vld [vmem:[#allocation6 + $0x20] sm:$0xf]
        %v1645 = vld [vmem:[#allocation6 + $0x24] sm:$0xff]
        %v1646 = vld [vmem:[#allocation6 + $0x2c] sm:$0xf]
        %v1647 = vld [vmem:[#allocation2] sm:$0xff]
        %v1648 = vld [vmem:[#allocation2 + $0x8] sm:$0xff]
        %v1649 = vld [vmem:[#allocation2 + $0x10] sm:$0xff]
        %v1650 = vld [vmem:[#allocation2 + $0x18] sm:$0xff]
        %v1651 = vld [vmem:[#allocation2 + $0x20] sm:$0xff]
        %v1652 = vld [vmem:[#allocation2 + $0x28] sm:$0xff]
        %v1653 = vld [vmem:[#allocation2 + $0x30] sm:$0xff]
        %v1654 = vld [vmem:[#allocation2 + $0x38] sm:$0xff]
        %v1655 = vld [vmem:[#allocation2 + $0x40] sm:$0xff]
        %v1656 = vld [vmem:[#allocation2 + $0x48] sm:$0xff]
        %v1657 = vld [vmem:[#allocation2 + $0x50] sm:$0xff]
        %v1658 = vld [vmem:[#allocation2 + $0x58] sm:$0xff]
        %v1659 = vld [vmem:[#allocation2 + $0x60] sm:$0xff]
        %v1660 = vld [vmem:[#allocation2 + $0x68] sm:$0xff]
        %v1661 = vld [vmem:[#allocation2 + $0x70] sm:$0xff]
        %v1662 = vld [vmem:[#allocation2 + $0x78] sm:$0xff]
        %v1663 = vld [vmem:[#allocation2 + $0x80] sm:$0xff]
        %v1664 = vld [vmem:[#allocation2 + $0x88] sm:$0xff]
        %v1665 = vld [vmem:[#allocation2 + $0x90] sm:$0xff]
        %v1666 = vld [vmem:[#allocation2 + $0x98] sm:$0xff]
        %v1667 = vld [vmem:[#allocation2 + $0xa0] sm:$0xff]
        %v1668 = vld [vmem:[#allocation2 + $0xa8] sm:$0xff]
        %v1669 = vld [vmem:[#allocation2 + $0xb0] sm:$0xff]
        %v1670 = vld [vmem:[#allocation2 + $0xb8] sm:$0xff]
        %v1671 = vld [vmem:[#allocation2 + $0xc0] sm:$0xff]
        %v1672 = vld [vmem:[#allocation2 + $0xc8] sm:$0xff]
        %v1673 = vld [vmem:[#allocation2 + $0xd0] sm:$0xff]
        %v1674 = vld [vmem:[#allocation2 + $0xd8] sm:$0xff]
        %v1675 = vld [vmem:[#allocation2 + $0xe0] sm:$0xff]
        %v1676 = vld [vmem:[#allocation2 + $0xe8] sm:$0xff]
        %v1677 = vld [vmem:[#allocation2 + $0xf0] sm:$0xff]
        %v1678 = vld [vmem:[#allocation2 + $0xf8] sm:$0xff]
        %v1679 = vld [vmem:[#allocation2 + $0x100] sm:$0xff]
        %v1680 = vld [vmem:[#allocation2 + $0x108] sm:$0xff]
        %v1681 = vld [vmem:[#allocation2 + $0x110] sm:$0xff]
        %v1682 = vld [vmem:[#allocation2 + $0x118] sm:$0xff]
        %v1683 = vld [vmem:[#allocation2 + $0x120] sm:$0xff]
        %v1684 = vld [vmem:[#allocation2 + $0x128] sm:$0xff]
        %v1685 = vld [vmem:[#allocation2 + $0x130] sm:$0xff]
        %v1686 = vld [vmem:[#allocation2 + $0x138] sm:$0xff]
        %v1687 = vld [vmem:[#allocation2 + $0x140] sm:$0xff]
        %v1688 = vld [vmem:[#allocation2 + $0x148] sm:$0xff]
        %v1689 = vld [vmem:[#allocation2 + $0x150] sm:$0xff]
        %v1690 = vld [vmem:[#allocation2 + $0x158] sm:$0xff]
        %v1691 = vld [vmem:[#allocation2 + $0x160] sm:$0xff]
        %v1692 = vld [vmem:[#allocation2 + $0x168] sm:$0xff]
        %v1693 = vld [vmem:[#allocation2 + $0x170] sm:$0xff]
        %v1694 = vld [vmem:[#allocation2 + $0x178] sm:$0xff]
        %v1695 = vld [vmem:[#allocation2 + $0x180] sm:$0xff]
        %v1696 = vld [vmem:[#allocation2 + $0x188] sm:$0xff]
        %v1697 = vld [vmem:[#allocation2 + $0x190] sm:$0xff]
        %v1698 = vld [vmem:[#allocation2 + $0x198] sm:$0xff]
        %v1699 = vld [vmem:[#allocation2 + $0x1a0] sm:$0xff]
        %v1700 = vld [vmem:[#allocation2 + $0x1a8] sm:$0xff]
        %v1701 = vld [vmem:[#allocation2 + $0x1b0] sm:$0xff]
        %v1702 = vld [vmem:[#allocation2 + $0x1b8] sm:$0xff]
        %v1703 = vld [vmem:[#allocation2 + $0x1c0] sm:$0xff]
        %v1704 = vld [vmem:[#allocation2 + $0x1c8] sm:$0xff]
        %v1705 = vld [vmem:[#allocation2 + $0x1d0] sm:$0xff]
        %v1706 = vld [vmem:[#allocation2 + $0x1d8] sm:$0xff]
        %v1707 = vld [vmem:[#allocation2 + $0x1e0] sm:$0xff]
        %v1708 = vld [vmem:[#allocation2 + $0x1e8] sm:$0xff]
        %v1709 = vld [vmem:[#allocation2 + $0x1f0] sm:$0xff]
        %v1710 = vld [vmem:[#allocation2 + $0x1f8] sm:$0xff]
        %v1711 = vld [vmem:[#allocation2 + $0x200] sm:$0xff]
        %v1712 = vld [vmem:[#allocation2 + $0x208] sm:$0xff]
        %v1713 = vld [vmem:[#allocation2 + $0x210] sm:$0xff]
        %v1714 = vld [vmem:[#allocation2 + $0x218] sm:$0xff]
        %v1715 = vld [vmem:[#allocation2 + $0x220] sm:$0xff]
        %v1716 = vld [vmem:[#allocation2 + $0x228] sm:$0xff]
        %v1717 = vld [vmem:[#allocation2 + $0x230] sm:$0xff]
        %v1718 = vld [vmem:[#allocation2 + $0x238] sm:$0xff]
        %v1727 = vunpack.c.l.b16 %v1639
        %v1728 = vunpack.c.h.b16 %v1639
        %v1729 = vunpack.c.l.b16 %v1640
        %v1730 = vunpack.c.l.b16 %v1641
        %v1731 = vunpack.c.h.b16 %v1641
        %v1732 = vunpack.c.l.b16 %v1642
        %v1733 = vunpack.c.l.b16 %v1643
        %v1734 = vunpack.c.h.b16 %v1643
        %v1735 = vunpack.c.l.b16 %v1644
        %v1736 = vunpack.c.l.b16 %v1645
        %v1737 = vunpack.c.h.b16 %v1645
        %v1738 = vunpack.c.l.b16 %v1646
        %v1739 = vpack.c.b16 %v1730, %v1727
        %v1740 = vpack.c.b16 %v1731, %v1728
        %v1741 = vpack.c.b16 %v1732, %v1729
        %v1742 = vpack.c.b16 %v1736, %v1733
        %v1743 = vpack.c.b16 %v1737, %v1734
        %v1744 = vpack.c.b16 %v1738, %v1735
        %v1821 = vunpack.c.l.b16 %v1647
        %v1822 = vunpack.c.h.b16 %v1647
        %v1823 = vunpack.c.l.b16 %v1648
        %v1824 = vunpack.c.h.b16 %v1648
        %v1825 = vunpack.c.l.b16 %v1649
        %v1826 = vunpack.c.h.b16 %v1649
        %v1827 = vunpack.c.l.b16 %v1650
        %v1828 = vunpack.c.h.b16 %v1650
        %v1829 = vunpack.c.l.b16 %v1651
        %v1830 = vunpack.c.h.b16 %v1651
        %v1831 = vunpack.c.l.b16 %v1652
        %v1832 = vunpack.c.h.b16 %v1652
        %v1833 = vunpack.c.l.b16 %v1653
        %v1834 = vunpack.c.h.b16 %v1653
        %v1835 = vunpack.c.l.b16 %v1654
        %v1836 = vunpack.c.h.b16 %v1654
        %v1837 = vunpack.c.l.b16 %v1655
        %v1838 = vunpack.c.h.b16 %v1655
        %v1839 = vunpack.c.l.b16 %v1656
        %v1840 = vunpack.c.h.b16 %v1656
        %v1841 = vunpack.c.l.b16 %v1657
        %v1842 = vunpack.c.h.b16 %v1657
        %v1843 = vunpack.c.l.b16 %v1658
        %v1844 = vunpack.c.h.b16 %v1658
        %v1845 = vunpack.c.l.b16 %v1659
        %v1846 = vunpack.c.h.b16 %v1659
        %v1847 = vunpack.c.l.b16 %v1660
        %v1848 = vunpack.c.h.b16 %v1660
        %v1849 = vunpack.c.l.b16 %v1661
        %v1850 = vunpack.c.h.b16 %v1661
        %v1851 = vunpack.c.l.b16 %v1662
        %v1852 = vunpack.c.h.b16 %v1662
        %v1853 = vunpack.c.l.b16 %v1663
        %v1854 = vunpack.c.h.b16 %v1663
        %v1855 = vunpack.c.l.b16 %v1664
        %v1856 = vunpack.c.h.b16 %v1664
        %v1857 = vunpack.c.l.b16 %v1665
        %v1858 = vunpack.c.h.b16 %v1665
        %v1859 = vunpack.c.l.b16 %v1666
        %v1860 = vunpack.c.h.b16 %v1666
        %v1861 = vunpack.c.l.b16 %v1667
        %v1862 = vunpack.c.h.b16 %v1667
        %v1863 = vunpack.c.l.b16 %v1668
        %v1864 = vunpack.c.h.b16 %v1668
        %v1865 = vunpack.c.l.b16 %v1669
        %v1866 = vunpack.c.h.b16 %v1669
        %v1867 = vunpack.c.l.b16 %v1670
        %v1868 = vunpack.c.h.b16 %v1670
        %v1869 = vunpack.c.l.b16 %v1671
        %v1870 = vunpack.c.h.b16 %v1671
        %v1871 = vunpack.c.l.b16 %v1672
        %v1872 = vunpack.c.h.b16 %v1672
        %v1873 = vunpack.c.l.b16 %v1673
        %v1874 = vunpack.c.h.b16 %v1673
        %v1875 = vunpack.c.l.b16 %v1674
        %v1876 = vunpack.c.h.b16 %v1674
        %v1877 = vunpack.c.l.b16 %v1675
        %v1878 = vunpack.c.h.b16 %v1675
        %v1879 = vunpack.c.l.b16 %v1676
        %v1880 = vunpack.c.h.b16 %v1676
        %v1881 = vunpack.c.l.b16 %v1677
        %v1882 = vunpack.c.h.b16 %v1677
        %v1883 = vunpack.c.l.b16 %v1678
        %v1884 = vunpack.c.h.b16 %v1678
        %v1885 = vunpack.c.l.b16 %v1679
        %v1886 = vunpack.c.h.b16 %v1679
        %v1887 = vunpack.c.l.b16 %v1680
        %v1888 = vunpack.c.h.b16 %v1680
        %v1889 = vunpack.c.l.b16 %v1681
        %v1890 = vunpack.c.h.b16 %v1681
        %v1891 = vunpack.c.l.b16 %v1682
        %v1892 = vunpack.c.h.b16 %v1682
        %v1893 = vunpack.c.l.b16 %v1683
        %v1894 = vunpack.c.h.b16 %v1683
        %v1895 = vunpack.c.l.b16 %v1684
        %v1896 = vunpack.c.h.b16 %v1684
        %v1897 = vunpack.c.l.b16 %v1685
        %v1898 = vunpack.c.h.b16 %v1685
        %v1899 = vunpack.c.l.b16 %v1686
        %v1900 = vunpack.c.h.b16 %v1686
        %v1901 = vunpack.c.l.b16 %v1687
        %v1902 = vunpack.c.h.b16 %v1687
        %v1903 = vunpack.c.l.b16 %v1688
        %v1904 = vunpack.c.h.b16 %v1688
        %v1905 = vunpack.c.l.b16 %v1689
        %v1906 = vunpack.c.h.b16 %v1689
        %v1907 = vunpack.c.l.b16 %v1690
        %v1908 = vunpack.c.h.b16 %v1690
        %v1909 = vunpack.c.l.b16 %v1691
        %v1910 = vunpack.c.h.b16 %v1691
        %v1911 = vunpack.c.l.b16 %v1692
        %v1912 = vunpack.c.h.b16 %v1692
        %v1913 = vunpack.c.l.b16 %v1693
        %v1914 = vunpack.c.h.b16 %v1693
        %v1915 = vunpack.c.l.b16 %v1694
        %v1916 = vunpack.c.h.b16 %v1694
        %v1917 = vunpack.c.l.b16 %v1695
        %v1918 = vunpack.c.h.b16 %v1695
        %v1919 = vunpack.c.l.b16 %v1696
        %v1920 = vunpack.c.h.b16 %v1696
        %v1921 = vunpack.c.l.b16 %v1697
        %v1922 = vunpack.c.h.b16 %v1697
        %v1923 = vunpack.c.l.b16 %v1698
        %v1924 = vunpack.c.h.b16 %v1698
        %v1925 = vunpack.c.l.b16 %v1699
        %v1926 = vunpack.c.h.b16 %v1699
        %v1927 = vunpack.c.l.b16 %v1700
        %v1928 = vunpack.c.h.b16 %v1700
        %v1929 = vunpack.c.l.b16 %v1701
        %v1930 = vunpack.c.h.b16 %v1701
        %v1931 = vunpack.c.l.b16 %v1702
        %v1932 = vunpack.c.h.b16 %v1702
        %v1933 = vunpack.c.l.b16 %v1703
        %v1934 = vunpack.c.h.b16 %v1703
        %v1935 = vunpack.c.l.b16 %v1704
        %v1936 = vunpack.c.h.b16 %v1704
        %v1937 = vunpack.c.l.b16 %v1705
        %v1938 = vunpack.c.h.b16 %v1705
        %v1939 = vunpack.c.l.b16 %v1706
        %v1940 = vunpack.c.h.b16 %v1706
        %v1941 = vunpack.c.l.b16 %v1707
        %v1942 = vunpack.c.h.b16 %v1707
        %v1943 = vunpack.c.l.b16 %v1708
        %v1944 = vunpack.c.h.b16 %v1708
        %v1945 = vunpack.c.l.b16 %v1709
        %v1946 = vunpack.c.h.b16 %v1709
        %v1947 = vunpack.c.l.b16 %v1710
        %v1948 = vunpack.c.h.b16 %v1710
        %v1949 = vunpack.c.l.b16 %v1711
        %v1950 = vunpack.c.h.b16 %v1711
        %v1951 = vunpack.c.l.b16 %v1712
        %v1952 = vunpack.c.h.b16 %v1712
        %v1953 = vunpack.c.l.b16 %v1713
        %v1954 = vunpack.c.h.b16 %v1713
        %v1955 = vunpack.c.l.b16 %v1714
        %v1956 = vunpack.c.h.b16 %v1714
        %v1957 = vunpack.c.l.b16 %v1715
        %v1958 = vunpack.c.h.b16 %v1715
        %v1959 = vunpack.c.l.b16 %v1716
        %v1960 = vunpack.c.h.b16 %v1716
        %v1961 = vunpack.c.l.b16 %v1717
        %v1962 = vunpack.c.h.b16 %v1717
        %v1963 = vunpack.c.l.b16 %v1718
        %v1964 = vunpack.c.h.b16 %v1718
        %v1965 = vpack.c.b16 %v1825, %v1821
        %v1966 = vpack.c.b16 %v1826, %v1822
        %v1967 = vpack.c.b16 %v1827, %v1823
        %v1968 = vpack.c.b16 %v1828, %v1824
        %v1969 = vpack.c.b16 %v1833, %v1829
        %v1970 = vpack.c.b16 %v1834, %v1830
        %v1971 = vpack.c.b16 %v1835, %v1831
        %v1972 = vpack.c.b16 %v1836, %v1832
        %v1973 = vpack.c.b16 %v1841, %v1837
        %v1974 = vpack.c.b16 %v1842, %v1838
        %v1975 = vpack.c.b16 %v1843, %v1839
        %v1976 = vpack.c.b16 %v1844, %v1840
        %v1977 = vpack.c.b16 %v1849, %v1845
        %v1978 = vpack.c.b16 %v1850, %v1846
        %v1979 = vpack.c.b16 %v1851, %v1847
        %v1980 = vpack.c.b16 %v1852, %v1848
        %v1981 = vpack.c.b16 %v1857, %v1853
        %v1982 = vpack.c.b16 %v1858, %v1854
        %v1983 = vpack.c.b16 %v1859, %v1855
        %v1984 = vpack.c.b16 %v1860, %v1856
        %v1985 = vpack.c.b16 %v1865, %v1861
        %v1986 = vpack.c.b16 %v1866, %v1862
        %v1987 = vpack.c.b16 %v1867, %v1863
        %v1988 = vpack.c.b16 %v1868, %v1864
        %v1989 = vpack.c.b16 %v1873, %v1869
        %v1990 = vpack.c.b16 %v1874, %v1870
        %v1991 = vpack.c.b16 %v1875, %v1871
        %v1992 = vpack.c.b16 %v1876, %v1872
        %v1993 = vpack.c.b16 %v1881, %v1877
        %v1994 = vpack.c.b16 %v1882, %v1878
        %v1995 = vpack.c.b16 %v1883, %v1879
        %v1996 = vpack.c.b16 %v1884, %v1880
        %v1997 = vpack.c.b16 %v1889, %v1885
        %v1998 = vpack.c.b16 %v1890, %v1886
        %v1999 = vpack.c.b16 %v1891, %v1887
        %v2000 = vpack.c.b16 %v1892, %v1888
        %v2001 = vpack.c.b16 %v1897, %v1893
        %v2002 = vpack.c.b16 %v1898, %v1894
        %v2003 = vpack.c.b16 %v1899, %v1895
        %v2004 = vpack.c.b16 %v1900, %v1896
        %v2005 = vpack.c.b16 %v1905, %v1901
        %v2006 = vpack.c.b16 %v1906, %v1902
        %v2007 = vpack.c.b16 %v1907, %v1903
        %v2008 = vpack.c.b16 %v1908, %v1904
        %v2009 = vpack.c.b16 %v1913, %v1909
        %v2010 = vpack.c.b16 %v1914, %v1910
        %v2011 = vpack.c.b16 %v1915, %v1911
        %v2012 = vpack.c.b16 %v1916, %v1912
        %v2013 = vpack.c.b16 %v1921, %v1917
        %v2014 = vpack.c.b16 %v1922, %v1918
        %v2015 = vpack.c.b16 %v1923, %v1919
        %v2016 = vpack.c.b16 %v1924, %v1920
        %v2017 = vpack.c.b16 %v1929, %v1925
        %v2018 = vpack.c.b16 %v1930, %v1926
        %v2019 = vpack.c.b16 %v1931, %v1927
        %v2020 = vpack.c.b16 %v1932, %v1928
        %v2021 = vpack.c.b16 %v1937, %v1933
        %v2022 = vpack.c.b16 %v1938, %v1934
        %v2023 = vpack.c.b16 %v1939, %v1935
        %v2024 = vpack.c.b16 %v1940, %v1936
        %v2025 = vpack.c.b16 %v1945, %v1941
        %v2026 = vpack.c.b16 %v1946, %v1942
        %v2027 = vpack.c.b16 %v1947, %v1943
        %v2028 = vpack.c.b16 %v1948, %v1944
        %v2029 = vpack.c.b16 %v1953, %v1949
        %v2030 = vpack.c.b16 %v1954, %v1950
        %v2031 = vpack.c.b16 %v1955, %v1951
        %v2032 = vpack.c.b16 %v1956, %v1952
        %v2033 = vpack.c.b16 %v1961, %v1957
        %v2034 = vpack.c.b16 %v1962, %v1958
        %v2035 = vpack.c.b16 %v1963, %v1959
        %v2036 = vpack.c.b16 %v1964, %v1960
        %vm2109 = vcmask 261120
        %v2111 = vsel %vm2109, %v1741, 0
        %v2114 = vsel %vm2109, %v1744, 0
        %2116 = vmatpush.bf16.msra.mxu0 %v1993
        %2117 = vmatpush.bf16.msra.mxu0 %v1989
        %2118 = vmatpush.bf16.msra.mxu0 %v1985
        %2119 = vmatpush.bf16.msra.mxu0 %v1981
        %2120 = vmatpush.bf16.msra.mxu0 %v1977
        %2121 = vmatpush.bf16.msra.mxu0 %v1973
        %2122 = vmatpush.bf16.msra.mxu0 %v1969
        %2123 = vmatpush.bf16.msra.mxu0 %v1965
        %2124 = vmatmul.bf16.gmra.mxu0 %v1739
        %v2125 = vpop.f32.mrf.mxu0
        %v2126 = vadd.f32 0.0, %v2125
        %v2127 = vpop.f32.mrf.mxu0
        %v2128 = vadd.f32 0.0, %v2127
        %2129 = vmatmul.bf16.gmra.mxu0 %v1742
        %v2130 = vpop.f32.mrf.mxu0
        %v2131 = vadd.f32 0.0, %v2130
        %v2132 = vpop.f32.mrf.mxu0
        %v2133 = vadd.f32 0.0, %v2132
        %2134 = vdwg.mxu0
        %2135 = vmatpush.bf16.msra.mxu0 %v2025
        %2136 = vmatpush.bf16.msra.mxu0 %v2021
        %2137 = vmatpush.bf16.msra.mxu0 %v2017
        %2138 = vmatpush.bf16.msra.mxu0 %v2013
        %2139 = vmatpush.bf16.msra.mxu0 %v2009
        %2140 = vmatpush.bf16.msra.mxu0 %v2005
        %2141 = vmatpush.bf16.msra.mxu0 %v2001
        %2142 = vmatpush.bf16.msra.mxu0 %v1997
        %2143 = vmatmul.bf16.gmra.mxu0 %v1740
        %v2144 = vpop.f32.mrf.mxu0
        %v2145 = vadd.f32 %v2126, %v2144
        %v2146 = vpop.f32.mrf.mxu0
        %v2147 = vadd.f32 %v2128, %v2146
        %2148 = vmatmul.bf16.gmra.mxu0 %v1743
        %v2149 = vpop.f32.mrf.mxu0
        %v2150 = vadd.f32 %v2131, %v2149
        %v2151 = vpop.f32.mrf.mxu0
        %v2152 = vadd.f32 %v2133, %v2151
        %2153 = vdwg.mxu0
        %2154 = vmatpush.bf16.msra.mxu0 0
        %2155 = vmatpush.bf16.msra.mxu0 0
        %2156 = vmatpush.bf16.msra.mxu0 0
        %2157 = vmatpush.bf16.msra.mxu0 0
        %2158 = vmatpush.bf16.msra.mxu0 0
        %2159 = vmatpush.bf16.msra.mxu0 0
        %2160 = vmatpush.bf16.msra.mxu0 %v2033
        %2161 = vmatpush.bf16.msra.mxu0 %v2029
        %2162 = vmatmul.bf16.gmra.mxu0 %v2111
        %v2163 = vpop.f32.mrf.mxu0
        %v2164 = vadd.f32 %v2145, %v2163
        %v2165 = vpop.f32.mrf.mxu0
        %v2166 = vadd.f32 %v2147, %v2165
        %2167 = vmatmul.bf16.gmra.mxu0 %v2114
        %v2168 = vpop.f32.mrf.mxu0
        %v2169 = vadd.f32 %v2150, %v2168
        %v2170 = vpop.f32.mrf.mxu0
        %v2171 = vadd.f32 %v2152, %v2170
        %2172 = vdwg.mxu0
        %2173 = vmatpush.bf16.msra.mxu0 %v1994
        %2174 = vmatpush.bf16.msra.mxu0 %v1990
        %2175 = vmatpush.bf16.msra.mxu0 %v1986
        %2176 = vmatpush.bf16.msra.mxu0 %v1982
        %2177 = vmatpush.bf16.msra.mxu0 %v1978
        %2178 = vmatpush.bf16.msra.mxu0 %v1974
        %2179 = vmatpush.bf16.msra.mxu0 %v1970
        %2180 = vmatpush.bf16.msra.mxu0 %v1966
        %2181 = vmatmul.bf16.gmra.mxu0 %v1739
        %v2182 = vpop.f32.mrf.mxu0
        %v2183 = vadd.f32 0.0, %v2182
        %v2184 = vpop.f32.mrf.mxu0
        %v2185 = vadd.f32 0.0, %v2184
        %2186 = vmatmul.bf16.gmra.mxu0 %v1742
        %v2187 = vpop.f32.mrf.mxu0
        %v2188 = vadd.f32 0.0, %v2187
        %v2189 = vpop.f32.mrf.mxu0
        %v2190 = vadd.f32 0.0, %v2189
        %2191 = vdwg.mxu0
        %2192 = vmatpush.bf16.msra.mxu0 %v2026
        %2193 = vmatpush.bf16.msra.mxu0 %v2022
        %2194 = vmatpush.bf16.msra.mxu0 %v2018
        %2195 = vmatpush.bf16.msra.mxu0 %v2014
        %2196 = vmatpush.bf16.msra.mxu0 %v2010
        %2197 = vmatpush.bf16.msra.mxu0 %v2006
        %2198 = vmatpush.bf16.msra.mxu0 %v2002
        %2199 = vmatpush.bf16.msra.mxu0 %v1998
        %2200 = vmatmul.bf16.gmra.mxu0 %v1740
        %v2201 = vpop.f32.mrf.mxu0
        %v2202 = vadd.f32 %v2183, %v2201
        %v2203 = vpop.f32.mrf.mxu0
        %v2204 = vadd.f32 %v2185, %v2203
        %2205 = vmatmul.bf16.gmra.mxu0 %v1743
        %v2206 = vpop.f32.mrf.mxu0
        %v2207 = vadd.f32 %v2188, %v2206
        %v2208 = vpop.f32.mrf.mxu0
        %v2209 = vadd.f32 %v2190, %v2208
        %2210 = vdwg.mxu0
        %2211 = vmatpush.bf16.msra.mxu0 0
        %2212 = vmatpush.bf16.msra.mxu0 0
        %2213 = vmatpush.bf16.msra.mxu0 0
        %2214 = vmatpush.bf16.msra.mxu0 0
        %2215 = vmatpush.bf16.msra.mxu0 0
        %2216 = vmatpush.bf16.msra.mxu0 0
        %2217 = vmatpush.bf16.msra.mxu0 %v2034
        %2218 = vmatpush.bf16.msra.mxu0 %v2030
        %2219 = vmatmul.bf16.gmra.mxu0 %v2111
        %v2220 = vpop.f32.mrf.mxu0
        %v2221 = vadd.f32 %v2202, %v2220
        %v2222 = vpop.f32.mrf.mxu0
        %v2223 = vadd.f32 %v2204, %v2222
        %2224 = vmatmul.bf16.gmra.mxu0 %v2114
        %v2225 = vpop.f32.mrf.mxu0
        %v2226 = vadd.f32 %v2207, %v2225
        %v2227 = vpop.f32.mrf.mxu0
        %v2228 = vadd.f32 %v2209, %v2227
        %2229 = vdwg.mxu0
        %2230 = vmatpush.bf16.msra.mxu0 %v1995
        %2231 = vmatpush.bf16.msra.mxu0 %v1991
        %2232 = vmatpush.bf16.msra.mxu0 %v1987
        %2233 = vmatpush.bf16.msra.mxu0 %v1983
        %2234 = vmatpush.bf16.msra.mxu0 %v1979
        %2235 = vmatpush.bf16.msra.mxu0 %v1975
        %2236 = vmatpush.bf16.msra.mxu0 %v1971
        %2237 = vmatpush.bf16.msra.mxu0 %v1967
        %2238 = vmatmul.bf16.gmra.mxu0 %v1739
        %v2239 = vpop.f32.mrf.mxu0
        %v2240 = vadd.f32 0.0, %v2239
        %v2241 = vpop.f32.mrf.mxu0
        %v2242 = vadd.f32 0.0, %v2241
        %2243 = vmatmul.bf16.gmra.mxu0 %v1742
        %v2244 = vpop.f32.mrf.mxu0
        %v2245 = vadd.f32 0.0, %v2244
        %v2246 = vpop.f32.mrf.mxu0
        %v2247 = vadd.f32 0.0, %v2246
        %2248 = vdwg.mxu0
        %2249 = vmatpush.bf16.msra.mxu0 %v2027
        %2250 = vmatpush.bf16.msra.mxu0 %v2023
        %2251 = vmatpush.bf16.msra.mxu0 %v2019
        %2252 = vmatpush.bf16.msra.mxu0 %v2015
        %2253 = vmatpush.bf16.msra.mxu0 %v2011
        %2254 = vmatpush.bf16.msra.mxu0 %v2007
        %2255 = vmatpush.bf16.msra.mxu0 %v2003
        %2256 = vmatpush.bf16.msra.mxu0 %v1999
        %2257 = vmatmul.bf16.gmra.mxu0 %v1740
        %v2258 = vpop.f32.mrf.mxu0
        %v2259 = vadd.f32 %v2240, %v2258
        %v2260 = vpop.f32.mrf.mxu0
        %v2261 = vadd.f32 %v2242, %v2260
        %2262 = vmatmul.bf16.gmra.mxu0 %v1743
        %v2263 = vpop.f32.mrf.mxu0
        %v2264 = vadd.f32 %v2245, %v2263
        %v2265 = vpop.f32.mrf.mxu0
        %v2266 = vadd.f32 %v2247, %v2265
        %2267 = vdwg.mxu0
        %2268 = vmatpush.bf16.msra.mxu0 0
        %2269 = vmatpush.bf16.msra.mxu0 0
        %2270 = vmatpush.bf16.msra.mxu0 0
        %2271 = vmatpush.bf16.msra.mxu0 0
        %2272 = vmatpush.bf16.msra.mxu0 0
        %2273 = vmatpush.bf16.msra.mxu0 0
        %2274 = vmatpush.bf16.msra.mxu0 %v2035
        %2275 = vmatpush.bf16.msra.mxu0 %v2031
        %2276 = vmatmul.bf16.gmra.mxu0 %v2111
        %v2277 = vpop.f32.mrf.mxu0
        %v2278 = vadd.f32 %v2259, %v2277
        %v2279 = vpop.f32.mrf.mxu0
        %v2280 = vadd.f32 %v2261, %v2279
        %2281 = vmatmul.bf16.gmra.mxu0 %v2114
        %v2282 = vpop.f32.mrf.mxu0
        %v2283 = vadd.f32 %v2264, %v2282
        %v2284 = vpop.f32.mrf.mxu0
        %v2285 = vadd.f32 %v2266, %v2284
        %2286 = vdwg.mxu0
        %2287 = vmatpush.bf16.msra.mxu0 %v1996
        %2288 = vmatpush.bf16.msra.mxu0 %v1992
        %2289 = vmatpush.bf16.msra.mxu0 %v1988
        %2290 = vmatpush.bf16.msra.mxu0 %v1984
        %2291 = vmatpush.bf16.msra.mxu0 %v1980
        %2292 = vmatpush.bf16.msra.mxu0 %v1976
        %2293 = vmatpush.bf16.msra.mxu0 %v1972
        %2294 = vmatpush.bf16.msra.mxu0 %v1968
        %2295 = vmatmul.bf16.gmra.mxu0 %v1739
        %v2296 = vpop.f32.mrf.mxu0
        %v2297 = vadd.f32 0.0, %v2296
        %v2298 = vpop.f32.mrf.mxu0
        %v2299 = vadd.f32 0.0, %v2298
        %2300 = vmatmul.bf16.gmra.mxu0 %v1742
        %v2301 = vpop.f32.mrf.mxu0
        %v2302 = vadd.f32 0.0, %v2301
        %v2303 = vpop.f32.mrf.mxu0
        %v2304 = vadd.f32 0.0, %v2303
        %2305 = vdwg.mxu0
        %2306 = vmatpush.bf16.msra.mxu0 %v2028
        %2307 = vmatpush.bf16.msra.mxu0 %v2024
        %2308 = vmatpush.bf16.msra.mxu0 %v2020
        %2309 = vmatpush.bf16.msra.mxu0 %v2016
        %2310 = vmatpush.bf16.msra.mxu0 %v2012
        %2311 = vmatpush.bf16.msra.mxu0 %v2008
        %2312 = vmatpush.bf16.msra.mxu0 %v2004
        %2313 = vmatpush.bf16.msra.mxu0 %v2000
        %2314 = vmatmul.bf16.gmra.mxu0 %v1740
        %v2315 = vpop.f32.mrf.mxu0
        %v2316 = vadd.f32 %v2297, %v2315
        %v2317 = vpop.f32.mrf.mxu0
        %v2318 = vadd.f32 %v2299, %v2317
        %2319 = vmatmul.bf16.gmra.mxu0 %v1743
        %v2320 = vpop.f32.mrf.mxu0
        %v2321 = vadd.f32 %v2302, %v2320
        %v2322 = vpop.f32.mrf.mxu0
        %v2323 = vadd.f32 %v2304, %v2322
        %2324 = vdwg.mxu0
        %2325 = vmatpush.bf16.msra.mxu0 0
        %2326 = vmatpush.bf16.msra.mxu0 0
        %2327 = vmatpush.bf16.msra.mxu0 0
        %2328 = vmatpush.bf16.msra.mxu0 0
        %2329 = vmatpush.bf16.msra.mxu0 0
        %2330 = vmatpush.bf16.msra.mxu0 0
        %2331 = vmatpush.bf16.msra.mxu0 %v2036
        %2332 = vmatpush.bf16.msra.mxu0 %v2032
        %2333 = vmatmul.bf16.gmra.mxu0 %v2111
        %v2334 = vpop.f32.mrf.mxu0
        %v2335 = vadd.f32 %v2316, %v2334
        %v2336 = vpop.f32.mrf.mxu0
        %v2337 = vadd.f32 %v2318, %v2336
        %2338 = vmatmul.bf16.gmra.mxu0 %v2114
        %v2339 = vpop.f32.mrf.mxu0
        %v2340 = vadd.f32 %v2321, %v2339
        %v2341 = vpop.f32.mrf.mxu0
        %v2342 = vadd.f32 %v2323, %v2341
        %2343 = vdwg.mxu0
        %v2344 = vld [vmem:[%s2] sm:$0xff]
        %v2345 = vld [vmem:[%s2 + $0x8] sm:$0xff]
        %v2346 = vld [vmem:[%s2 + $0x10] sm:$0xff]
        %v2347 = vld [vmem:[%s2 + $0x18] sm:$0xff]
        %2349 = vset.pattern.permute.xlu0 0
        %2350 = vperm.xlu0 %2349, %v2344
        %v2351 = vpop.permute.xlu0 %2350
        %2354 = vset.pattern.permute.xlu0 0
        %2355 = vperm.xlu0 %2354, %v2345
        %v2356 = vpop.permute.xlu0 %2355
        %2359 = vset.pattern.permute.xlu0 0
        %2360 = vperm.xlu0 %2359, %v2346
        %v2361 = vpop.permute.xlu0 %2360
        %2364 = vset.pattern.permute.xlu0 0
        %2365 = vperm.xlu0 %2364, %v2347
        %v2366 = vpop.permute.xlu0 %2365
        %v2368 = vmul.f32 %v2164, %v2351
        %v2369 = vmul.f32 %v2221, %v2351
        %v2370 = vmul.f32 %v2278, %v2351
        %v2371 = vmul.f32 %v2335, %v2351
        %v2372 = vmul.f32 %v2166, %v2356
        %v2373 = vmul.f32 %v2223, %v2356
        %v2374 = vmul.f32 %v2280, %v2356
        %v2375 = vmul.f32 %v2337, %v2356
        %v2376 = vmul.f32 %v2169, %v2361
        %v2377 = vmul.f32 %v2226, %v2361
        %v2378 = vmul.f32 %v2283, %v2361
        %v2379 = vmul.f32 %v2340, %v2361
        %v2380 = vmul.f32 %v2171, %v2366
        %v2381 = vmul.f32 %v2228, %v2366
        %v2382 = vmul.f32 %v2285, %v2366
        %v2383 = vmul.f32 %v2342, %v2366
        %2384 = vset.pattern.permute.xlu0 1
        %2385 = vperm.xlu0 %2384, %v2344
        %v2386 = vpop.permute.xlu0 %2385
        %2388 = vset.pattern.permute.xlu0 1
        %2389 = vperm.xlu0 %2388, %v2345
        %v2390 = vpop.permute.xlu0 %2389
        %2392 = vset.pattern.permute.xlu0 1
        %2393 = vperm.xlu0 %2392, %v2346
        %v2394 = vpop.permute.xlu0 %2393
        %2396 = vset.pattern.permute.xlu0 1
        %2397 = vperm.xlu0 %2396, %v2347
        %v2398 = vpop.permute.xlu0 %2397
        %v2400 = vadd.f32 %v2368, %v2386
        %v2401 = vadd.f32 %v2369, %v2386
        %v2402 = vadd.f32 %v2370, %v2386
        %v2403 = vadd.f32 %v2371, %v2386
        %v2404 = vadd.f32 %v2372, %v2390
        %v2405 = vadd.f32 %v2373, %v2390
        %v2406 = vadd.f32 %v2374, %v2390
        %v2407 = vadd.f32 %v2375, %v2390
        %v2408 = vadd.f32 %v2376, %v2394
        %v2409 = vadd.f32 %v2377, %v2394
        %v2410 = vadd.f32 %v2378, %v2394
        %v2411 = vadd.f32 %v2379, %v2394
        %v2412 = vadd.f32 %v2380, %v2398
        %v2413 = vadd.f32 %v2381, %v2398
        %v2414 = vadd.f32 %v2382, %v2398
        %v2415 = vadd.f32 %v2383, %v2398
        %v2416 = vmax.f32 %v2400, -1.0
        %v2417 = vmax.f32 %v2401, -1.0
        %v2418 = vmax.f32 %v2402, -1.0
        %v2419 = vmax.f32 %v2403, -1.0
        %v2420 = vmax.f32 %v2404, -1.0
        %v2421 = vmax.f32 %v2405, -1.0
        %v2422 = vmax.f32 %v2406, -1.0
        %v2423 = vmax.f32 %v2407, -1.0
        %v2424 = vmax.f32 %v2408, -1.0
        %v2425 = vmax.f32 %v2409, -1.0
        %v2426 = vmax.f32 %v2410, -1.0
        %v2427 = vmax.f32 %v2411, -1.0
        %v2428 = vmax.f32 %v2412, -1.0
        %v2429 = vmax.f32 %v2413, -1.0
        %v2430 = vmax.f32 %v2414, -1.0
        %v2431 = vmax.f32 %v2415, -1.0
        %v2432 = vmin.f32 %v2416, 1.0
        %v2433 = vmin.f32 %v2417, 1.0
        %v2434 = vmin.f32 %v2418, 1.0
        %v2435 = vmin.f32 %v2419, 1.0
        %v2436 = vmin.f32 %v2420, 1.0
        %v2437 = vmin.f32 %v2421, 1.0
        %v2438 = vmin.f32 %v2422, 1.0
        %v2439 = vmin.f32 %v2423, 1.0
        %v2440 = vmin.f32 %v2424, 1.0
        %v2441 = vmin.f32 %v2425, 1.0
        %v2442 = vmin.f32 %v2426, 1.0
        %v2443 = vmin.f32 %v2427, 1.0
        %v2444 = vmin.f32 %v2428, 1.0
        %v2445 = vmin.f32 %v2429, 1.0
        %v2446 = vmin.f32 %v2430, 1.0
        %v2447 = vmin.f32 %v2431, 1.0
        %v2448 = vld [vmem:[%s251] sm:$0xff]
        %v2449 = vld [vmem:[%s251 + $0x8] sm:$0xff]
        %v2450 = vld [vmem:[%s251 + $0x10] sm:$0xff]
        %v2451 = vld [vmem:[%s251 + $0x18] sm:$0xff]
        %v2452 = vld [vmem:[%s251 + $0x20] sm:$0xff]
        %v2453 = vld [vmem:[%s251 + $0x28] sm:$0xff]
        %v2454 = vld [vmem:[%s251 + $0x30] sm:$0xff]
        %v2455 = vld [vmem:[%s251 + $0x38] sm:$0xff]
        %v2456 = vadd.f32 %v2448, %v2432
        %v2457 = vadd.f32 %v2449, %v2433
        %v2458 = vadd.f32 %v2450, %v2436
        %v2459 = vadd.f32 %v2451, %v2437
        %v2460 = vadd.f32 %v2452, %v2440
        %v2461 = vadd.f32 %v2453, %v2441
        %v2462 = vadd.f32 %v2454, %v2444
        %v2463 = vadd.f32 %v2455, %v2445
        %2464 = vst [vmem:[%s251] sm:$0xff] %v2456
        %2465 = vst [vmem:[%s251 + $0x8] sm:$0xff] %v2457
        %2466 = vst [vmem:[%s251 + $0x10] sm:$0xff] %v2458
        %2467 = vst [vmem:[%s251 + $0x18] sm:$0xff] %v2459
        %2468 = vst [vmem:[%s251 + $0x20] sm:$0xff] %v2460
        %2469 = vst [vmem:[%s251 + $0x28] sm:$0xff] %v2461
        %2470 = vst [vmem:[%s251 + $0x30] sm:$0xff] %v2462
        %2471 = vst [vmem:[%s251 + $0x38] sm:$0xff] %v2463
        %v2472 = vld [vmem:[%s1630] sm:$0xff]
        %v2473 = vld [vmem:[%s1630 + $0x8] sm:$0xff]
        %v2474 = vld [vmem:[%s1630 + $0x10] sm:$0xff]
        %v2475 = vld [vmem:[%s1630 + $0x18] sm:$0xff]
        %v2476 = vld [vmem:[%s1630 + $0x20] sm:$0xff]
        %v2477 = vld [vmem:[%s1630 + $0x28] sm:$0xff]
        %v2478 = vld [vmem:[%s1630 + $0x30] sm:$0xff]
        %v2479 = vld [vmem:[%s1630 + $0x38] sm:$0xff]
        %v2480 = vadd.f32 %v2472, %v2434
        %v2481 = vadd.f32 %v2473, %v2435
        %v2482 = vadd.f32 %v2474, %v2438
        %v2483 = vadd.f32 %v2475, %v2439
        %v2484 = vadd.f32 %v2476, %v2442
        %v2485 = vadd.f32 %v2477, %v2443
        %v2486 = vadd.f32 %v2478, %v2446
        %v2487 = vadd.f32 %v2479, %v2447
        %2488 = vst [vmem:[%s1630] sm:$0xff] %v2480
        %2489 = vst [vmem:[%s1630 + $0x8] sm:$0xff] %v2481
        %2490 = vst [vmem:[%s1630 + $0x10] sm:$0xff] %v2482
        %2491 = vst [vmem:[%s1630 + $0x18] sm:$0xff] %v2483
        %2492 = vst [vmem:[%s1630 + $0x20] sm:$0xff] %v2484
        %2493 = vst [vmem:[%s1630 + $0x28] sm:$0xff] %v2485
        %2494 = vst [vmem:[%s1630 + $0x30] sm:$0xff] %v2486
        %2495 = vst [vmem:[%s1630 + $0x38] sm:$0xff] %v2487
        %s2496 = sand.u32 %s119, 1
        %s2497 = scalar_lea.sflag [#allocation5], %s2496
        %s2498 = sand.u32 %s119, 1
        %s2499 = smul.addr %s2498, 128
        %s2500 = scalar_lea.vmem [#allocation9], %s2499
        // Predicated region
        $region49: #{tpu_custom_call.1} parent=35 // pred_check
          %p2501 = pneg %p129
        $region50: #{tpu_custom_call.1} parent=35 // pred_check_branch
          %2503 = sbr.rel (%p2501) target = $region52
        $region51: #{tpu_custom_call.1} parent=35 // pred_region
          %s2504 = smul.u32 2, %s22
          %2506 = vsyncadd %s2497, 0
          %s2507 = smul.addr %s2504, 8
          %s2508 = smul.addr %s2507, 8
          %s2509 = scalar_lea.hbm %s4, %s2508
          %s2510 = sshll.u32 %s2500, 4
          %s2511 = int_to_ptr.vmem [resolvable:$true] %s2510
          %s2512 = sshll.u32 %s2509, 4
          %s2513 = int_to_ptr.hbm [resolvable:$true] %s2512
          %2518 = dma.vmem_to_hbm [thread:$0]  %s2511, 2048, %s2513, %s2497, 256, 256, 16
        $region52: #{tpu_custom_call.1} parent=35 // pred_fallthru
          _
      $region36: #{tpu_custom_call.1} parent=5 // pred_fallthru
        _
      %p2519 = scmp.le.s32.totalorder 2, %s17
      // Predicated region
      $region53: #{tpu_custom_call.1} parent=5 // pred_check
        %p2520 = pneg %p2519
      $region54: #{tpu_custom_call.1} parent=5 // pred_check_branch
        %2522 = sbr.rel (%p2520) target = $region56
      $region55: #{tpu_custom_call.1} parent=5 // pred_region
        %s2523 = ssub.s32 %s17, 2
        // Predicated region
        $region57: #{tpu_custom_call.1} parent=55 // pred_check
          %p2524 = pneg %p135
        $region58: #{tpu_custom_call.1} parent=55 // pred_check_branch
          %2526 = sbr.rel (%p2524) target = $region60
        $region59: #{tpu_custom_call.1} parent=55 // pred_region
          %s2527 = sand.u32 %s120, 1
          %s2528 = scalar_lea.sflag [#allocation5], %s2527
          %s2529 = sand.u32 %s120, 1
          %s2530 = smul.addr %s2529, 128
          %s2531 = scalar_lea.vmem [#allocation9], %s2530
          %2533 = dma.done %s2528, 2048
        $region60: #{tpu_custom_call.1} parent=55 // pred_fallthru
          _
      $region56: #{tpu_custom_call.1} parent=5 // pred_fallthru
        _
    $region6: #{tpu_custom_call.1} parent=1 // loop_footer
      %s21 = sadd.s32 1, %s17
    $region7: #{tpu_custom_call.1} parent=1 // loop_footer_branch
      %16 = sbr.rel target = $region3
    $region8: #{tpu_custom_call.1} parent=1 // loop_exit
      _
    %2534 = vsyncpa [#allocation4], 1
    %s2535 = scalar_lea.sflag [#allocation4], 1
    %2536 = vsyncpa %s2535, 1
    %2537 = vsyncpa [#allocation7], 1
    %2538 = vsyncpa [#allocation5], 1
    %s2539 = scalar_lea.sflag [#allocation5], 1
    %2540 = vsyncpa %s2539, 1

</llo_original>
